<compile_context>
chip_gen: v7x
topology: tpu7x:2x2x1
jax: 0.10.0
libtpu: 0.0.40
codegen_flags: <defaults>
</compile_context>

<pallas_src>
import jax
import jax.numpy as jnp
import numpy as np
from jax.experimental import pallas as pl
from jax.experimental.pallas import tpu as pltpu


def attention_kernel(enc_ref, dec_ref, we_ref, wd_ref, bias_ref, wf_ref,
                     awe_ref, alpha_ref):
    # enc_ref:   (BB, P, E) bf16   block of encoder_out
    # dec_ref:   (BB, D)    bf16   block of decoder_hidden
    # we_ref:    (E, A)     bf16   encoder_att weight (input-major)
    # wd_ref:    (D, A)     bf16   decoder_att weight (input-major)
    # bias_ref:  (1, A)     f32    folded encoder_att + decoder_att biases
    # wf_ref:    (1, A)     f32    full_att weight (row vector)
    # awe_ref:   (BB, 1, E) f32    attention-weighted encoding output
    # alpha_ref: (BB, P)    f32    attention weights output (lane-dense in P)
    BB, P, E = enc_ref.shape
    A = we_ref.shape[1]

    enc = enc_ref[...]                                               # (BB,P,E) bf16

    # Projections on the MXU (bf16 operands, f32 accumulation).
    att1 = jnp.dot(enc.reshape(BB * P, E), we_ref[...],
                   preferred_element_type=jnp.float32)               # (BB*P, A)
    att2 = jnp.dot(dec_ref[...], wd_ref[...],
                   preferred_element_type=jnp.float32)               # (BB, A)
    att2 = att2 + bias_ref[...]                                      # folded biases

    # relu(att1 + att2.unsqueeze(1)) in f32 on the VPU.
    h = jnp.maximum(att1.reshape(BB, P, A) + att2[:, None, :], 0.0)  # (BB,P,A)

    # Attention logits over pixels, lane-dense in P.  (The full_att bias is a
    # constant shift of every logit and cancels in the softmax -> omitted.)
    att = jnp.sum(h * wf_ref[...], axis=-1)                          # (BB, P)

    # Softmax over the pixel (lane) axis; divide via the EUP reciprocal.
    m = jnp.max(att, axis=-1, keepdims=True)                         # (BB, 1)
    e = jnp.exp(att - m)                                             # (BB, P)
    denom = jnp.sum(e, axis=-1, keepdims=True)                       # (BB, 1)
    alpha = e * pl.reciprocal(denom, approx=True)                    # (BB, P)

    # Attention-weighted encoding on the MXU: (BB,1,P) @ (BB,P,E) -> (BB,1,E).
    awe = jnp.einsum("bqp,bpe->bqe",
                     alpha[:, None, :].astype(jnp.bfloat16), enc,
                     preferred_element_type=jnp.float32)             # (BB,1,E)

    awe_ref[...] = awe
    alpha_ref[...] = alpha


def attention_forward(encoder_out, decoder_hidden, params, block_b=None):
    B, P, E = encoder_out.shape
    D = decoder_hidden.shape[1]
    A = params["w_enc"].shape[1]

    if block_b is None:
        # Largest batch block <= 8 that divides B.  BB*P should be a multiple
        # of 256 (v6e/v7x MXU) / 128 (v5e), and B//BB >= 2 keeps both v7x TCs
        # busy.
        block_b = next(bb for bb in (8, 4, 2, 1) if B % bb == 0)
    BB = block_b
    assert B % BB == 0, "batch must be divisible by the batch block"
    grid = (B // BB,)

    # bf16 operands for the MXU; f32 for biases / full_att weight.
    enc_bf = encoder_out.astype(jnp.bfloat16)
    dec_bf = decoder_hidden.astype(jnp.bfloat16)
    w_enc = params["w_enc"].astype(jnp.bfloat16)
    w_dec = params["w_dec"].astype(jnp.bfloat16)
    bias = (params["b_enc"] + params["b_dec"]).astype(jnp.float32)   # (1, A)
    w_full = params["w_full"].astype(jnp.float32)                    # (1, A)

    awe, alpha = pl.pallas_call(
        attention_kernel,
        out_shape=(
            jax.ShapeDtypeStruct((B, 1, E), jnp.float32),
            jax.ShapeDtypeStruct((B, P), jnp.float32),
        ),
        grid_spec=pltpu.PrefetchScalarGridSpec(
            num_scalar_prefetch=0,
            grid=grid,
            in_specs=[
                pl.BlockSpec((BB, P, E), lambda i: (i, 0, 0)),   # encoder_out
                pl.BlockSpec((BB, D), lambda i: (i, 0)),         # decoder_hidden
                pl.BlockSpec((E, A), lambda i: (0, 0)),          # w_enc
                pl.BlockSpec((D, A), lambda i: (0, 0)),          # w_dec
                pl.BlockSpec((1, A), lambda i: (0, 0)),          # folded bias
                pl.BlockSpec((1, A), lambda i: (0, 0)),          # w_full
            ],
            out_specs=[
                pl.BlockSpec((BB, 1, E), lambda i: (i, 0, 0)),   # awe
                pl.BlockSpec((BB, P), lambda i: (i, 0)),         # alpha
            ],
        ),
        compiler_params=pltpu.CompilerParams(
            dimension_semantics=("parallel",),
        ),
    )(enc_bf, dec_bf, w_enc, w_dec, bias, w_full)

    return awe.reshape(B, E), alpha


def init_params(key, encoder_dim, decoder_dim, attention_dim):
    ks = jax.random.split(key, 6)
    s = 0.1
    return {
        "w_enc":  s * jax.random.normal(ks[0], (encoder_dim, attention_dim), jnp.float32),
        "b_enc":  s * jax.random.normal(ks[1], (1, attention_dim), jnp.float32),
        "w_dec":  s * jax.random.normal(ks[2], (decoder_dim, attention_dim), jnp.float32),
        "b_dec":  s * jax.random.normal(ks[3], (1, attention_dim), jnp.float32),
        "w_full": s * jax.random.normal(ks[4], (1, attention_dim), jnp.float32),
        "b_full": s * jax.random.normal(ks[5], (1, 1), jnp.float32),
    }


def ref_forward(encoder_out, decoder_hidden, p):
    # Pure-JAX f32 reference matching the PyTorch forward exactly.
    att1 = encoder_out @ p["w_enc"] + p["b_enc"][0]                 # (B, P, A)
    att2 = decoder_hidden @ p["w_dec"] + p["b_dec"][0]              # (B, A)
    h = jnp.maximum(att1 + att2[:, None, :], 0.0)                   # (B, P, A)
    att = jnp.einsum("bpa,a->bp", h, p["w_full"][0]) + p["b_full"][0, 0]
    alpha = jax.nn.softmax(att, axis=1)                             # (B, P)
    awe = jnp.einsum("bpe,bp->be", encoder_out, alpha)              # (B, E)
    return awe, alpha


if __name__ == "__main__":
    B, P = 16, 32                 # batch, num_pixels
    E, D, A = 128, 128, 128       # encoder_dim, decoder_dim, attention_dim

    key = jax.random.PRNGKey(0)
    k_enc, k_dec, k_par = jax.random.split(key, 3)
    encoder_out = jax.random.normal(k_enc, (B, P, E), jnp.float32)
    decoder_hidden = jax.random.normal(k_dec, (B, D), jnp.float32)
    params = init_params(k_par, E, D, A)

    awe, alpha = attention_forward(encoder_out, decoder_hidden, params)
    awe = jax.block_until_ready(awe)
    alpha = jax.block_until_ready(alpha)

    awe_ref, alpha_ref = ref_forward(encoder_out, decoder_hidden, params)
    # Tolerance accounts for bf16 matmul operands (f32 accumulation) and the
    # EUP approximate reciprocal in the softmax.
    np.testing.assert_allclose(np.asarray(awe), np.asarray(awe_ref), atol=2e-2, rtol=2e-2)
    np.testing.assert_allclose(np.asarray(alpha), np.asarray(alpha_ref), atol=2e-2, rtol=2e-2)

    print("KERNEL_OK")
</pallas_src>

<mosaic_0001>
module attributes {stable_mosaic.version = 11 : i64} {
  func.func @attention_kernel(%arg0: i32, %arg1: memref<8x32x128xbf16, #tpu.memory_space<vmem>>, %arg2: memref<8x128xbf16, #tpu.memory_space<vmem>>, %arg3: memref<128x128xbf16, #tpu.memory_space<vmem>>, %arg4: memref<128x128xbf16, #tpu.memory_space<vmem>>, %arg5: memref<1x128xf32, #tpu.memory_space<vmem>>, %arg6: memref<1x128xf32, #tpu.memory_space<vmem>>, %arg7: memref<8x1x128xf32, #tpu.memory_space<vmem>>, %arg8: memref<8x32xf32, #tpu.memory_space<vmem>>) attributes {dimension_semantics = [#tpu.dimension_semantics<parallel>], iteration_bounds = array<i64: 2>, scalar_prefetch = 0 : i64, scratch_operands = 0 : i64, tpu.core_type = #tpu.core_type<tc>, window_params = [{transform_indices = @transform_0, window_bounds = array<i64: 8, 32, 128>}, {transform_indices = @transform_1, window_bounds = array<i64: 8, 128>}, {pipeline_mode = #tpu.pipeline_mode<synchronous>, transform_indices = @transform_2, window_bounds = array<i64: 128, 128>}, {pipeline_mode = #tpu.pipeline_mode<synchronous>, transform_indices = @transform_3, window_bounds = array<i64: 128, 128>}, {pipeline_mode = #tpu.pipeline_mode<synchronous>, transform_indices = @transform_4, window_bounds = array<i64: 1, 128>}, {pipeline_mode = #tpu.pipeline_mode<synchronous>, transform_indices = @transform_5, window_bounds = array<i64: 1, 128>}, {transform_indices = @transform_6, window_bounds = array<i64: 8, 1, 128>}, {transform_indices = @transform_7, window_bounds = array<i64: 8, 32>}]} {
    %c0 = arith.constant 0 : index
    %c0_0 = arith.constant 0 : index
    %c0_1 = arith.constant 0 : index
    %0 = vector.load %arg1[%c0, %c0_0, %c0_1] : memref<8x32x128xbf16, #tpu.memory_space<vmem>>, vector<8x32x128xbf16>
    %1 = vector.shape_cast %0 : vector<8x32x128xbf16> to vector<256x128xbf16>
    %c0_2 = arith.constant 0 : index
    %c0_3 = arith.constant 0 : index
    %2 = vector.load %arg3[%c0_2, %c0_3] : memref<128x128xbf16, #tpu.memory_space<vmem>>, vector<128x128xbf16>
    %cst = arith.constant dense<0.000000e+00> : vector<256x128xf32>
    %3 = tpu.matmul %1, %2, %cst {dimension_numbers = #tpu.dot_dimension_numbers<[1], [0], [0], [1], [0, 0, 1, 1], [], []>} : vector<256x128xbf16>, vector<128x128xbf16>, vector<256x128xf32> -> vector<256x128xf32>
    %c0_4 = arith.constant 0 : index
    %c0_5 = arith.constant 0 : index
    %4 = vector.load %arg2[%c0_4, %c0_5] : memref<8x128xbf16, #tpu.memory_space<vmem>>, vector<8x128xbf16>
    %c0_6 = arith.constant 0 : index
    %c0_7 = arith.constant 0 : index
    %5 = vector.load %arg4[%c0_6, %c0_7] : memref<128x128xbf16, #tpu.memory_space<vmem>>, vector<128x128xbf16>
    %cst_8 = arith.constant dense<0.000000e+00> : vector<8x128xf32>
    %6 = tpu.matmul %4, %5, %cst_8 {dimension_numbers = #tpu.dot_dimension_numbers<[1], [0], [0], [1], [0, 0, 1, 1], [], []>} : vector<8x128xbf16>, vector<128x128xbf16>, vector<8x128xf32> -> vector<8x128xf32>
    %c0_9 = arith.constant 0 : index
    %c0_10 = arith.constant 0 : index
    %7 = vector.load %arg5[%c0_9, %c0_10] : memref<1x128xf32, #tpu.memory_space<vmem>>, vector<1x128xf32>
    %8 = vector.broadcast %7 : vector<1x128xf32> to vector<8x128xf32>
    %9 = arith.addf %6, %8 : vector<8x128xf32>
    %10 = vector.shape_cast %3 : vector<256x128xf32> to vector<8x32x128xf32>
    %11 = vector.shape_cast %9 : vector<8x128xf32> to vector<8x1x128xf32>
    %12 = vector.broadcast %11 : vector<8x1x128xf32> to vector<8x32x128xf32>
    %13 = arith.addf %10, %12 : vector<8x32x128xf32>
    %cst_11 = arith.constant 0.000000e+00 : f32
    %14 = vector.broadcast %cst_11 : f32 to vector<8x32x128xf32>
    %15 = arith.maximumf %13, %14 : vector<8x32x128xf32>
    %c0_12 = arith.constant 0 : index
    %c0_13 = arith.constant 0 : index
    %16 = vector.load %arg6[%c0_12, %c0_13] : memref<1x128xf32, #tpu.memory_space<vmem>>, vector<1x128xf32>
    %17 = vector.shape_cast %16 : vector<1x128xf32> to vector<1x1x128xf32>
    %18 = vector.broadcast %17 : vector<1x1x128xf32> to vector<8x32x128xf32>
    %19 = arith.mulf %15, %18 : vector<8x32x128xf32>
    %cst_14 = arith.constant dense<0.000000e+00> : vector<8x32xf32>
    %20 = vector.multi_reduction <add>, %19, %cst_14 [2] : vector<8x32x128xf32> to vector<8x32xf32>
    %cst_15 = arith.constant dense<0xFF800000> : vector<8xf32>
    %21 = vector.multi_reduction <maximumf>, %20, %cst_15 [1] : vector<8x32xf32> to vector<8xf32>
    %22 = vector.shape_cast %21 : vector<8xf32> to vector<8x1xf32>
    %23 = vector.broadcast %22 : vector<8x1xf32> to vector<8x32xf32>
    %24 = arith.subf %20, %23 : vector<8x32xf32>
    %25 = math.exp %24 : vector<8x32xf32>
    %cst_16 = arith.constant dense<0.000000e+00> : vector<8xf32>
    %26 = vector.multi_reduction <add>, %25, %cst_16 [1] : vector<8x32xf32> to vector<8xf32>
    %27 = vector.shape_cast %26 : vector<8xf32> to vector<8x1xf32>
    %28 = tpu.reciprocal %27 {approx = true} : vector<8x1xf32> -> vector<8x1xf32>
    %29 = vector.broadcast %28 : vector<8x1xf32> to vector<8x32xf32>
    %30 = arith.mulf %25, %29 : vector<8x32xf32>
    %31 = vector.shape_cast %30 : vector<8x32xf32> to vector<8x1x32xf32>
    %32 = arith.truncf %31 : vector<8x1x32xf32> to vector<8x1x32xbf16>
    "tpu.trace_start"() <{level = 10 : i32, message = "bqp,bpe->bqe"}> : () -> ()
    %cst_17 = arith.constant dense<0.000000e+00> : vector<8x1x128xf32>
    %33 = tpu.matmul %32, %0, %cst_17 {dimension_numbers = #tpu.dot_dimension_numbers<[2], [1], [1], [2], [0, 0, 0, 1, 1, 2], [0], [0]>} : vector<8x1x32xbf16>, vector<8x32x128xbf16>, vector<8x1x128xf32> -> vector<8x1x128xf32>
    "tpu.trace_stop"() : () -> ()
    %c0_18 = arith.constant 0 : index
    %c0_19 = arith.constant 0 : index
    %c0_20 = arith.constant 0 : index
    %34 = vector.load %arg7[%c0_18, %c0_19, %c0_20] : memref<8x1x128xf32, #tpu.memory_space<vmem>>, vector<8x1x128xf32>
    tpu.vector_store %arg7[%c0_18, %c0_19, %c0_20], %33 {strides = array<i32>} : memref<8x1x128xf32, #tpu.memory_space<vmem>>, vector<8x1x128xf32>,
    %c0_21 = arith.constant 0 : index
    %c0_22 = arith.constant 0 : index
    %35 = vector.load %arg8[%c0_21, %c0_22] : memref<8x32xf32, #tpu.memory_space<vmem>>, vector<8x32xf32>
    tpu.vector_store %arg8[%c0_21, %c0_22], %30 {strides = array<i32>} : memref<8x32xf32, #tpu.memory_space<vmem>>, vector<8x32xf32>,
    return
  }
  func.func @transform_0(%arg0: i32) -> (i32, i32, i32) {
    %c0_i32 = arith.constant 0 : i32
    %c0_i32_0 = arith.constant 0 : i32
    %c0_i32_1 = arith.constant 0 : i32
    return %arg0, %c0_i32, %c0_i32_0 : i32, i32, i32
  }
  func.func @transform_1(%arg0: i32) -> (i32, i32) {
    %c0_i32 = arith.constant 0 : i32
    %c0_i32_0 = arith.constant 0 : i32
    return %arg0, %c0_i32 : i32, i32
  }
  func.func @transform_2(%arg0: i32) -> (i32, i32) {
    %c0_i32 = arith.constant 0 : i32
    %c0_i32_0 = arith.constant 0 : i32
    %c0_i32_1 = arith.constant 0 : i32
    return %c0_i32, %c0_i32_0 : i32, i32
  }
  func.func @transform_3(%arg0: i32) -> (i32, i32) {
    %c0_i32 = arith.constant 0 : i32
    %c0_i32_0 = arith.constant 0 : i32
    %c0_i32_1 = arith.constant 0 : i32
    return %c0_i32, %c0_i32_0 : i32, i32
  }
  func.func @transform_4(%arg0: i32) -> (i32, i32) {
    %c0_i32 = arith.constant 0 : i32
    %c0_i32_0 = arith.constant 0 : i32
    %c0_i32_1 = arith.constant 0 : i32
    return %c0_i32, %c0_i32_0 : i32, i32
  }
  func.func @transform_5(%arg0: i32) -> (i32, i32) {
    %c0_i32 = arith.constant 0 : i32
    %c0_i32_0 = arith.constant 0 : i32
    %c0_i32_1 = arith.constant 0 : i32
    return %c0_i32, %c0_i32_0 : i32, i32
  }
  func.func @transform_6(%arg0: i32) -> (i32, i32, i32) {
    %c0_i32 = arith.constant 0 : i32
    %c0_i32_0 = arith.constant 0 : i32
    %c0_i32_1 = arith.constant 0 : i32
    return %arg0, %c0_i32, %c0_i32_0 : i32, i32, i32
  }
  func.func @transform_7(%arg0: i32) -> (i32, i32) {
    %c0_i32 = arith.constant 0 : i32
    %c0_i32_0 = arith.constant 0 : i32
    return %arg0, %c0_i32 : i32, i32
  }
}

</mosaic_0001>

<llo_original>
// kernel: tpu_custom_call.1
$region0: #{tpu_custom_call.1}
  #allocation0 [shape = 'u32[]', space=smem, size = 0x4, offset = 0x4, fixed_abs, tag = 'smem constant byte address 0x4 - core index']
  #allocation1 [shape = 'u32[144,128]{1,0:T(1,128)}', space=vmem, size = 0x12000, scoped, tag = 'internal scratch']
  %s0 = inlined_call_operand.hbm [shape: bf16[16,32,128], index: 0, kind: input, shape index: {}]
  %s1 = inlined_call_operand.hbm [shape: bf16[16,128], index: 1, kind: input, shape index: {}]
  %s2 = inlined_call_operand.hbm [shape: bf16[128,128], index: 2, kind: input, shape index: {}]
  %s3 = inlined_call_operand.hbm [shape: bf16[128,128], index: 3, kind: input, shape index: {}]
  %s4 = inlined_call_operand.vmem [shape: f32[1,128], index: 4, kind: input, shape index: {}]
  %s5 = inlined_call_operand.vmem [shape: f32[1,128], index: 5, kind: input, shape index: {}]
  %s6 = inlined_call_operand.hbm [shape: f32[16,1,128], index: 6, kind: output, shape index: {0}]
  %s7 = inlined_call_operand.hbm [shape: f32[16,32], index: 7, kind: output, shape index: {1}]
  %8 = xla_tuple %s6, %s7
  %s9 = sld [smem:[#allocation0]]
  $region81: #{tpu_custom_call.1} parent=0
    _
  %s11 = ssub.s32 1, %s9
  %s12 = scalar_select 0, %s11, %s9
  $region1: #{tpu_custom_call.1} parent=0
    #allocation2 [shape = 'u8[131072]{0}', space=vmem, size = 0x20000, scoped, tag = 'input window, operand 0']
    #allocation3 [shape = 's32[2]{0}', space=sflag, size = 0x8, scoped, tag = 'scoped memory for tpu_custom_call.1']
    #allocation4 [shape = 's32[2]{0}', space=sflag, size = 0x8, scoped, tag = 'scoped memory for tpu_custom_call.1']
    #allocation5 [shape = 'u8[4096]{0}', space=vmem, size = 0x1000, scoped, tag = 'input window, operand 1']
    #allocation6 [shape = 's32[2]{0}', space=sflag, size = 0x8, scoped, tag = 'scoped memory for tpu_custom_call.1']
    #allocation7 [shape = 'u8[32768]{0}', space=vmem, size = 0x8000, scoped, tag = 'input window, operand 2, single buffered']
    #allocation8 [shape = 'u8[32768]{0}', space=vmem, size = 0x8000, scoped, tag = 'input window, operand 3, single buffered']
    #allocation9 [shape = 's32[1]{0}', space=sflag, size = 0x4, scoped, tag = 'scoped memory for tpu_custom_call.1']
    #allocation10 [shape = 'u8[8192]{0}', space=vmem, size = 0x2000, scoped, tag = 'output window, operand 0']
    #allocation11 [shape = 'u8[8192]{0}', space=vmem, size = 0x2000, scoped, tag = 'output window, operand 1']
    #allocation12 [shape = 's32[2]{0}', space=sflag, size = 0x8, scoped, tag = 'scoped memory for tpu_custom_call.1']
    %13 = vsyncpa [#allocation3], 0
    %s14 = scalar_lea.sflag [#allocation3], 1
    %15 = vsyncpa %s14, 0
    %16 = vsyncpa [#allocation6], 0
    %s17 = scalar_lea.sflag [#allocation6], 1
    %18 = vsyncpa %s17, 0
    %19 = vsyncpa [#allocation9], 0
    %20 = vsyncpa [#allocation4], 0
    %s21 = scalar_lea.sflag [#allocation4], 1
    %22 = vsyncpa %s21, 0
    %23 = vsyncpa [#allocation12], 0
    %s24 = scalar_lea.sflag [#allocation12], 1
    %25 = vsyncpa %s24, 0
    loop: start=0, step=1, limit=4
    $region2: #{tpu_custom_call.1} parent=1 // loop_pre_header
      _
    $region3: #{tpu_custom_call.1} parent=1 // loop_header
      %s27 = sphi 0, %s31
      %p28 = scmp.ge.s32.totalorder %s27, 4
      %s37 = sphi 0, %s39
      %s40 = sphi 0, %s37
      %s41 = sphi 0, %s40
      %s57 = sphi 0, %s41
      %s63 = sphi 0, %s65
      %s66 = sphi 0, %s63
      %s67 = sphi 0, %s66
      %s83 = sphi 0, %s67
      %s87 = sphi 0, %s87
      %s89 = sphi 0, %s87
      %s90 = sphi 0, %s89
      %s104 = sphi 0, %s90
      %s108 = sphi 0, %s108
      %s110 = sphi 0, %s108
      %s111 = sphi 0, %s110
      %s125 = sphi 0, %s111
      %s129 = sphi 0, %s129
      %s131 = sphi 0, %s129
      %s132 = sphi 0, %s131
      %s146 = sphi 0, %s132
      %s150 = sphi 0, %s150
      %s152 = sphi 0, %s150
      %s153 = sphi 0, %s152
      %s167 = sphi 0, %s153
      %s173 = sphi 0, %s175
      %s176 = sphi 0, %s173
      %s177 = sphi 0, %s176
      %s193 = sphi 0, %s177
      %s199 = sphi 0, %s201
      %s202 = sphi 0, %s199
      %s203 = sphi 0, %s202
      %s219 = sphi 0, %s203
    $region4: #{tpu_custom_call.1} parent=1 // loop_header_branch
      %30 = sbr.rel (%p28) target = $region8
    $region5: #{tpu_custom_call.1} parent=1 // loop_body
      %s32 = ssub.s32 %s27, 1
      %s33 = ssub.s32 %s27, 2
      %s34 = sadd.s32 %s27, 1
      %s35 = ssub.s32 %s27, %s34
      %p36 = scmp.eq.s32.totalorder %s35, 0
      %s38 = sadd.s32 %s37, 1
      %s39 = scalar_select %p36, %s37, %s38
      %p42 = pneg %p36
      %p43 = scmp.eq.s32.totalorder %s27, 1
      %p44 = por %p42, %p43
      %p45 = scmp.ne.s32.totalorder %s37, %s40
      %p46 = scmp.eq.s32.totalorder %s27, 0
      %p47 = por %p45, %p46
      %p48 = scmp.ne.s32.totalorder %s37, %s40
      %p49 = scmp.eq.s32.totalorder %s32, 1
      %p50 = por %p48, %p49
      %p51 = scmp.ne.s32.totalorder %s40, %s41
      %p52 = scmp.eq.s32.totalorder %s32, 0
      %p53 = por %p51, %p52
      %p54 = scmp.ne.s32.totalorder %s40, %s41
      %p55 = scmp.eq.s32.totalorder %s33, 1
      %p56 = por %p54, %p55
      %p58 = scmp.ne.s32.totalorder %s41, %s57
      %p59 = scmp.eq.s32.totalorder %s33, 0
      %p60 = por %p58, %p59
      %s61 = ssub.s32 %s27, %s34
      %p62 = scmp.eq.s32.totalorder %s61, 0
      %s64 = sadd.s32 %s63, 1
      %s65 = scalar_select %p62, %s63, %s64
      %p68 = pneg %p62
      %p69 = scmp.eq.s32.totalorder %s27, 1
      %p70 = por %p68, %p69
      %p71 = scmp.ne.s32.totalorder %s63, %s66
      %p72 = scmp.eq.s32.totalorder %s27, 0
      %p73 = por %p71, %p72
      %p74 = scmp.ne.s32.totalorder %s63, %s66
      %p75 = scmp.eq.s32.totalorder %s32, 1
      %p76 = por %p74, %p75
      %p77 = scmp.ne.s32.totalorder %s66, %s67
      %p78 = scmp.eq.s32.totalorder %s32, 0
      %p79 = por %p77, %p78
      %p80 = scmp.ne.s32.totalorder %s66, %s67
      %p81 = scmp.eq.s32.totalorder %s33, 1
      %p82 = por %p80, %p81
      %p84 = scmp.ne.s32.totalorder %s67, %s83
      %p85 = scmp.eq.s32.totalorder %s33, 0
      %p86 = por %p84, %p85
      %s88 = sadd.s32 %s87, 1
      %p91 = scmp.eq.s32.totalorder %s27, 1
      %p92 = scmp.ne.s32.totalorder %s87, %s89
      %p93 = scmp.eq.s32.totalorder %s27, 0
      %p94 = por %p92, %p93
      %p95 = scmp.ne.s32.totalorder %s87, %s89
      %p96 = scmp.eq.s32.totalorder %s32, 1
      %p97 = por %p95, %p96
      %p98 = scmp.ne.s32.totalorder %s89, %s90
      %p99 = scmp.eq.s32.totalorder %s32, 0
      %p100 = por %p98, %p99
      %p101 = scmp.ne.s32.totalorder %s89, %s90
      %p102 = scmp.eq.s32.totalorder %s33, 1
      %p103 = por %p101, %p102
      %p105 = scmp.ne.s32.totalorder %s90, %s104
      %p106 = scmp.eq.s32.totalorder %s33, 0
      %p107 = por %p105, %p106
      %s109 = sadd.s32 %s108, 1
      %p112 = scmp.eq.s32.totalorder %s27, 1
      %p113 = scmp.ne.s32.totalorder %s108, %s110
      %p114 = scmp.eq.s32.totalorder %s27, 0
      %p115 = por %p113, %p114
      %p116 = scmp.ne.s32.totalorder %s108, %s110
      %p117 = scmp.eq.s32.totalorder %s32, 1
      %p118 = por %p116, %p117
      %p119 = scmp.ne.s32.totalorder %s110, %s111
      %p120 = scmp.eq.s32.totalorder %s32, 0
      %p121 = por %p119, %p120
      %p122 = scmp.ne.s32.totalorder %s110, %s111
      %p123 = scmp.eq.s32.totalorder %s33, 1
      %p124 = por %p122, %p123
      %p126 = scmp.ne.s32.totalorder %s111, %s125
      %p127 = scmp.eq.s32.totalorder %s33, 0
      %p128 = por %p126, %p127
      %s130 = sadd.s32 %s129, 1
      %p133 = scmp.eq.s32.totalorder %s27, 1
      %p134 = scmp.ne.s32.totalorder %s129, %s131
      %p135 = scmp.eq.s32.totalorder %s27, 0
      %p136 = por %p134, %p135
      %p137 = scmp.ne.s32.totalorder %s129, %s131
      %p138 = scmp.eq.s32.totalorder %s32, 1
      %p139 = por %p137, %p138
      %p140 = scmp.ne.s32.totalorder %s131, %s132
      %p141 = scmp.eq.s32.totalorder %s32, 0
      %p142 = por %p140, %p141
      %p143 = scmp.ne.s32.totalorder %s131, %s132
      %p144 = scmp.eq.s32.totalorder %s33, 1
      %p145 = por %p143, %p144
      %p147 = scmp.ne.s32.totalorder %s132, %s146
      %p148 = scmp.eq.s32.totalorder %s33, 0
      %p149 = por %p147, %p148
      %s151 = sadd.s32 %s150, 1
      %p154 = scmp.eq.s32.totalorder %s27, 1
      %p155 = scmp.ne.s32.totalorder %s150, %s152
      %p156 = scmp.eq.s32.totalorder %s27, 0
      %p157 = por %p155, %p156
      %p158 = scmp.ne.s32.totalorder %s150, %s152
      %p159 = scmp.eq.s32.totalorder %s32, 1
      %p160 = por %p158, %p159
      %p161 = scmp.ne.s32.totalorder %s152, %s153
      %p162 = scmp.eq.s32.totalorder %s32, 0
      %p163 = por %p161, %p162
      %p164 = scmp.ne.s32.totalorder %s152, %s153
      %p165 = scmp.eq.s32.totalorder %s33, 1
      %p166 = por %p164, %p165
      %p168 = scmp.ne.s32.totalorder %s153, %s167
      %p169 = scmp.eq.s32.totalorder %s33, 0
      %p170 = por %p168, %p169
      %s171 = ssub.s32 %s27, %s34
      %p172 = scmp.eq.s32.totalorder %s171, 0
      %s174 = sadd.s32 %s173, 1
      %s175 = scalar_select %p172, %s173, %s174
      %p178 = pneg %p172
      %p179 = scmp.eq.s32.totalorder %s27, 1
      %p180 = por %p178, %p179
      %p181 = scmp.ne.s32.totalorder %s173, %s176
      %p182 = scmp.eq.s32.totalorder %s27, 0
      %p183 = por %p181, %p182
      %p184 = scmp.ne.s32.totalorder %s173, %s176
      %p185 = scmp.eq.s32.totalorder %s32, 1
      %p186 = por %p184, %p185
      %p187 = scmp.ne.s32.totalorder %s176, %s177
      %p188 = scmp.eq.s32.totalorder %s32, 0
      %p189 = por %p187, %p188
      %p190 = scmp.ne.s32.totalorder %s176, %s177
      %p191 = scmp.eq.s32.totalorder %s33, 1
      %p192 = por %p190, %p191
      %p194 = scmp.ne.s32.totalorder %s177, %s193
      %p195 = scmp.eq.s32.totalorder %s33, 0
      %p196 = por %p194, %p195
      %s197 = ssub.s32 %s27, %s34
      %p198 = scmp.eq.s32.totalorder %s197, 0
      %s200 = sadd.s32 %s199, 1
      %s201 = scalar_select %p198, %s199, %s200
      %p204 = pneg %p198
      %p205 = scmp.eq.s32.totalorder %s27, 1
      %p206 = por %p204, %p205
      %p207 = scmp.ne.s32.totalorder %s199, %s202
      %p208 = scmp.eq.s32.totalorder %s27, 0
      %p209 = por %p207, %p208
      %p210 = scmp.ne.s32.totalorder %s199, %s202
      %p211 = scmp.eq.s32.totalorder %s32, 1
      %p212 = por %p210, %p211
      %p213 = scmp.ne.s32.totalorder %s202, %s203
      %p214 = scmp.eq.s32.totalorder %s32, 0
      %p215 = por %p213, %p214
      %p216 = scmp.ne.s32.totalorder %s202, %s203
      %p217 = scmp.eq.s32.totalorder %s33, 1
      %p218 = por %p216, %p217
      %p220 = scmp.ne.s32.totalorder %s203, %s219
      %p221 = scmp.eq.s32.totalorder %s33, 0
      %p222 = por %p220, %p221
      %p223 = scmp.le.s32.totalorder 1, %s27
      %p224 = scmp.lt.s32.totalorder %s27, 3
      %p225 = pnand %p223, %p224
      %p226 = pneg %p225
      // Predicated region
      $region9: #{tpu_custom_call.1} parent=5 // pred_check
        _
      $region10: #{tpu_custom_call.1} parent=5 // pred_check_branch
        %228 = sbr.rel (%p225) target = $region12
      $region11: #{tpu_custom_call.1} parent=5 // pred_region
        %s229 = ssub.s32 %s27, 1
        // Predicated region
        $region13: #{tpu_custom_call.1} parent=11 // pred_check
          %p230 = pneg %p100
        $region14: #{tpu_custom_call.1} parent=11 // pred_check_branch
          %232 = sbr.rel (%p230) target = $region16
        $region15: #{tpu_custom_call.1} parent=11 // pred_region
          %s234 = ssub.s32 1024, 1024
          %235 = vsyncadd [#allocation6], %s234
          %s236 = sshll.u32 [#allocation7], 4
          %s237 = int_to_ptr.vmem [resolvable:$true] %s236
          %242 = dma.hbm_to_vmem [thread:$0]  %s2, 1024, %s237, [#allocation6], 64, 64, 4
        $region16: #{tpu_custom_call.1} parent=11 // pred_fallthru
          _
        // Predicated region
        $region17: #{tpu_custom_call.1} parent=11 // pred_check
          %p243 = pneg %p121
        $region18: #{tpu_custom_call.1} parent=11 // pred_check_branch
          %245 = sbr.rel (%p243) target = $region20
        $region19: #{tpu_custom_call.1} parent=11 // pred_region
          %s247 = ssub.s32 1024, 1024
          %248 = vsyncadd [#allocation9], %s247
          %s249 = sshll.u32 [#allocation8], 4
          %s250 = int_to_ptr.vmem [resolvable:$true] %s249
          %255 = dma.hbm_to_vmem [thread:$0]  %s3, 1024, %s250, [#allocation9], 64, 64, 4
        $region20: #{tpu_custom_call.1} parent=11 // pred_fallthru
          _
        // Predicated region
        $region21: #{tpu_custom_call.1} parent=11 // pred_check
          %p256 = pneg %p142
        $region22: #{tpu_custom_call.1} parent=11 // pred_check_branch
          %258 = sbr.rel (%p256) target = $region24
        $region23: #{tpu_custom_call.1} parent=11 // pred_region
          _
        $region24: #{tpu_custom_call.1} parent=11 // pred_fallthru
          _
        // Predicated region
        $region25: #{tpu_custom_call.1} parent=11 // pred_check
          %p259 = pneg %p163
        $region26: #{tpu_custom_call.1} parent=11 // pred_check_branch
          %261 = sbr.rel (%p259) target = $region28
        $region27: #{tpu_custom_call.1} parent=11 // pred_region
          _
        $region28: #{tpu_custom_call.1} parent=11 // pred_fallthru
          _
      $region12: #{tpu_custom_call.1} parent=5 // pred_fallthru
        _
      %p262 = scmp.lt.s32.totalorder %s27, 2
      // Predicated region
      $region29: #{tpu_custom_call.1} parent=5 // pred_check
        %p263 = pneg %p262
      $region30: #{tpu_custom_call.1} parent=5 // pred_check_branch
        %265 = sbr.rel (%p263) target = $region32
      $region31: #{tpu_custom_call.1} parent=5 // pred_region
        // Predicated region
        $region33: #{tpu_custom_call.1} parent=31 // pred_check
          %p266 = pneg %p47
        $region34: #{tpu_custom_call.1} parent=31 // pred_check_branch
          %268 = sbr.rel (%p266) target = $region36
        $region35: #{tpu_custom_call.1} parent=31 // pred_region
          %s269 = sand.u32 %s37, 1
          %s270 = scalar_lea.sflag [#allocation3], %s269
          %s271 = sand.u32 %s37, 1
          %s272 = smul.addr %s271, 128
          %s273 = scalar_lea.vmem [#allocation2], %s272
          %s274 = smul.u32 8, %s27
          %s276 = ssub.s32 2048, 2048
          %277 = vsyncadd %s270, %s276
          %s278 = smul.addr %s274, 4
          %s279 = smul.addr %s278, 64
          %s280 = scalar_lea.hbm %s0, %s279
          %s281 = sshll.u32 %s273, 4
          %s282 = int_to_ptr.vmem [resolvable:$true] %s281
          %287 = dma.hbm_to_vmem [thread:$0]  %s280, 2048, %s282, %s270, 64, 64, 4
        $region36: #{tpu_custom_call.1} parent=31 // pred_fallthru
          _
        // Predicated region
        $region37: #{tpu_custom_call.1} parent=31 // pred_check
          %p288 = pneg %p73
        $region38: #{tpu_custom_call.1} parent=31 // pred_check_branch
          %290 = sbr.rel (%p288) target = $region40
        $region39: #{tpu_custom_call.1} parent=31 // pred_region
          %s291 = sand.u32 %s27, 1
          %s292 = scalar_lea.sflag [#allocation6], %s291
          %s293 = sand.u32 %s63, 1
          %s294 = smul.addr %s293, 4
          %s295 = scalar_lea.vmem [#allocation5], %s294
          %s297 = ssub.s32 64, 64
          %298 = vsyncadd %s292, %s297
          %s299 = smul.addr %s27, 64
          %s300 = scalar_lea.hbm %s1, %s299
          %s302 = sshll.u32 %s295, 4
          %s303 = int_to_ptr.vmem [resolvable:$true] %s302
          %305 = dma.hbm_to_vmem [thread:$0]  %s300, 64, %s303, %s292
        $region40: #{tpu_custom_call.1} parent=31 // pred_fallthru
          _
      $region32: #{tpu_custom_call.1} parent=5 // pred_fallthru
        _
      %p306 = scmp.le.s32.totalorder 1, %s27
      %p307 = scmp.lt.s32.totalorder %s27, 3
      %p308 = pnand %p306, %p307
      %p309 = pneg %p308
      // Predicated region
      $region41: #{tpu_custom_call.1} parent=5 // pred_check
        _
      $region42: #{tpu_custom_call.1} parent=5 // pred_check_branch
        %311 = sbr.rel (%p308) target = $region44
      $region43: #{tpu_custom_call.1} parent=5 // pred_region
        %s312 = ssub.s32 %s27, 1
        %s313 = sand.u32 %s40, 1
        %s314 = scalar_lea.sflag [#allocation3], %s313
        %s315 = sand.u32 %s40, 1
        %s316 = smul.addr %s315, 128
        %s317 = scalar_lea.vmem [#allocation2], %s316
        // Predicated region
        $region45: #{tpu_custom_call.1} parent=43 // pred_check
          %p318 = pneg %p53
        $region46: #{tpu_custom_call.1} parent=43 // pred_check_branch
          %320 = sbr.rel (%p318) target = $region48
        $region47: #{tpu_custom_call.1} parent=43 // pred_region
          %321 = dma.done %s314, 2048
        $region48: #{tpu_custom_call.1} parent=43 // pred_fallthru
          _
        %s322 = sand.u32 %s32, 1
        %s323 = scalar_lea.sflag [#allocation6], %s322
        %s324 = sand.u32 %s66, 1
        %s325 = smul.addr %s324, 4
        %s326 = scalar_lea.vmem [#allocation5], %s325
        // Predicated region
        $region49: #{tpu_custom_call.1} parent=43 // pred_check
          %p327 = pneg %p79
        $region50: #{tpu_custom_call.1} parent=43 // pred_check_branch
          %329 = sbr.rel (%p327) target = $region52
        $region51: #{tpu_custom_call.1} parent=43 // pred_region
          %330 = dma.done %s323, 64
        $region52: #{tpu_custom_call.1} parent=43 // pred_fallthru
          _
        // Predicated region
        $region53: #{tpu_custom_call.1} parent=43 // pred_check
          %p331 = pneg %p100
        $region54: #{tpu_custom_call.1} parent=43 // pred_check_branch
          %333 = sbr.rel (%p331) target = $region56
        $region55: #{tpu_custom_call.1} parent=43 // pred_region
          %334 = dma.done [#allocation6], 1024
        $region56: #{tpu_custom_call.1} parent=43 // pred_fallthru
          _
        // Predicated region
        $region57: #{tpu_custom_call.1} parent=43 // pred_check
          %p335 = pneg %p121
        $region58: #{tpu_custom_call.1} parent=43 // pred_check_branch
          %337 = sbr.rel (%p335) target = $region60
        $region59: #{tpu_custom_call.1} parent=43 // pred_region
          %338 = dma.done [#allocation9], 1024
        $region60: #{tpu_custom_call.1} parent=43 // pred_fallthru
          _
        %s339 = sand.u32 %s40, 1
        %s340 = scalar_lea.sflag [#allocation3], %s339
        %s341 = sand.u32 %s40, 1
        %s342 = smul.addr %s341, 128
        %s343 = scalar_lea.vmem [#allocation2], %s342
        %p344 = pneg %p53
        %p345 = pneg %p50
        %s346 = sand.u32 %s32, 1
        %s347 = scalar_lea.sflag [#allocation6], %s346
        %s348 = sand.u32 %s66, 1
        %s349 = smul.addr %s348, 4
        %s350 = scalar_lea.vmem [#allocation5], %s349
        %p351 = pneg %p79
        %p352 = pneg %p76
        %p353 = pneg %p100
        %p354 = pneg %p97
        %p355 = pneg %p121
        %p356 = pneg %p118
        %p357 = pneg %p142
        %p358 = pneg %p139
        %p359 = pneg %p163
        %p360 = pneg %p160
        %p361 = pneg %p189
        %p362 = pneg %p186
        %s363 = sand.u32 %s176, 1
        %s364 = scalar_lea.sflag [#allocation4], %s363
        %s365 = sand.u32 %s176, 1
        %s366 = smul.addr %s365, 8
        %s367 = scalar_lea.vmem [#allocation10], %s366
        %p368 = pneg %p215
        %p369 = pneg %p212
        %s370 = sand.u32 %s202, 1
        %s371 = scalar_lea.sflag [#allocation12], %s370
        %s372 = sand.u32 %s202, 1
        %s373 = smul.addr %s372, 8
        %s374 = scalar_lea.vmem [#allocation11], %s373
        %s375 = smul.u32 8, %s32
        %s376 = smul.u32 8, %s32
        %v378 = vld [vmem:[%s317] sm:$0xf]
        %v379 = vld [vmem:[%s317 + $0x4] sm:$0xf]
        %v380 = vld [vmem:[%s317 + $0x8] sm:$0xf]
        %v381 = vld [vmem:[%s317 + $0xc] sm:$0xf]
        %v382 = vld [vmem:[%s317 + $0x10] sm:$0xf]
        %v383 = vld [vmem:[%s317 + $0x14] sm:$0xf]
        %v384 = vld [vmem:[%s317 + $0x18] sm:$0xf]
        %v385 = vld [vmem:[%s317 + $0x1c] sm:$0xf]
        %v386 = vld [vmem:[%s317 + $0x20] sm:$0xf]
        %v387 = vld [vmem:[%s317 + $0x24] sm:$0xf]
        %v388 = vld [vmem:[%s317 + $0x28] sm:$0xf]
        %v389 = vld [vmem:[%s317 + $0x2c] sm:$0xf]
        %v390 = vld [vmem:[%s317 + $0x30] sm:$0xf]
        %v391 = vld [vmem:[%s317 + $0x34] sm:$0xf]
        %v392 = vld [vmem:[%s317 + $0x38] sm:$0xf]
        %v393 = vld [vmem:[%s317 + $0x3c] sm:$0xf]
        %v394 = vld [vmem:[%s317 + $0x40] sm:$0xf]
        %v395 = vld [vmem:[%s317 + $0x44] sm:$0xf]
        %v396 = vld [vmem:[%s317 + $0x48] sm:$0xf]
        %v397 = vld [vmem:[%s317 + $0x4c] sm:$0xf]
        %v398 = vld [vmem:[%s317 + $0x50] sm:$0xf]
        %v399 = vld [vmem:[%s317 + $0x54] sm:$0xf]
        %v400 = vld [vmem:[%s317 + $0x58] sm:$0xf]
        %v401 = vld [vmem:[%s317 + $0x5c] sm:$0xf]
        %v402 = vld [vmem:[%s317 + $0x60] sm:$0xf]
        %v403 = vld [vmem:[%s317 + $0x64] sm:$0xf]
        %v404 = vld [vmem:[%s317 + $0x68] sm:$0xf]
        %v405 = vld [vmem:[%s317 + $0x6c] sm:$0xf]
        %v406 = vld [vmem:[%s317 + $0x70] sm:$0xf]
        %v407 = vld [vmem:[%s317 + $0x74] sm:$0xf]
        %v408 = vld [vmem:[%s317 + $0x78] sm:$0xf]
        %v409 = vld [vmem:[%s317 + $0x7c] sm:$0xf]
        %v410 = vld [vmem:[#allocation7] sm:$0xf]
        %v411 = vld [vmem:[#allocation7 + $0x4] sm:$0xf]
        %v412 = vld [vmem:[#allocation7 + $0x8] sm:$0xf]
        %v413 = vld [vmem:[#allocation7 + $0xc] sm:$0xf]
        %v414 = vld [vmem:[#allocation7 + $0x10] sm:$0xf]
        %v415 = vld [vmem:[#allocation7 + $0x14] sm:$0xf]
        %v416 = vld [vmem:[#allocation7 + $0x18] sm:$0xf]
        %v417 = vld [vmem:[#allocation7 + $0x1c] sm:$0xf]
        %v418 = vld [vmem:[#allocation7 + $0x20] sm:$0xf]
        %v419 = vld [vmem:[#allocation7 + $0x24] sm:$0xf]
        %v420 = vld [vmem:[#allocation7 + $0x28] sm:$0xf]
        %v421 = vld [vmem:[#allocation7 + $0x2c] sm:$0xf]
        %v422 = vld [vmem:[#allocation7 + $0x30] sm:$0xf]
        %v423 = vld [vmem:[#allocation7 + $0x34] sm:$0xf]
        %v424 = vld [vmem:[#allocation7 + $0x38] sm:$0xf]
        %v425 = vld [vmem:[#allocation7 + $0x3c] sm:$0xf]
        %v458 = vunpack.c.l.b16 %v378
        %v459 = vunpack.c.l.b16 %v379
        %v460 = vunpack.c.l.b16 %v380
        %v461 = vunpack.c.l.b16 %v381
        %v462 = vunpack.c.l.b16 %v382
        %v463 = vunpack.c.l.b16 %v383
        %v464 = vunpack.c.l.b16 %v384
        %v465 = vunpack.c.l.b16 %v385
        %v466 = vunpack.c.l.b16 %v386
        %v467 = vunpack.c.l.b16 %v387
        %v468 = vunpack.c.l.b16 %v388
        %v469 = vunpack.c.l.b16 %v389
        %v470 = vunpack.c.l.b16 %v390
        %v471 = vunpack.c.l.b16 %v391
        %v472 = vunpack.c.l.b16 %v392
        %v473 = vunpack.c.l.b16 %v393
        %v474 = vunpack.c.l.b16 %v394
        %v475 = vunpack.c.l.b16 %v395
        %v476 = vunpack.c.l.b16 %v396
        %v477 = vunpack.c.l.b16 %v397
        %v478 = vunpack.c.l.b16 %v398
        %v479 = vunpack.c.l.b16 %v399
        %v480 = vunpack.c.l.b16 %v400
        %v481 = vunpack.c.l.b16 %v401
        %v482 = vunpack.c.l.b16 %v402
        %v483 = vunpack.c.l.b16 %v403
        %v484 = vunpack.c.l.b16 %v404
        %v485 = vunpack.c.l.b16 %v405
        %v486 = vunpack.c.l.b16 %v406
        %v487 = vunpack.c.l.b16 %v407
        %v488 = vunpack.c.l.b16 %v408
        %v489 = vunpack.c.l.b16 %v409
        %v490 = vpack.c.b16 %v459, %v458
        %v491 = vpack.c.b16 %v461, %v460
        %v492 = vpack.c.b16 %v463, %v462
        %v493 = vpack.c.b16 %v465, %v464
        %v494 = vpack.c.b16 %v467, %v466
        %v495 = vpack.c.b16 %v469, %v468
        %v496 = vpack.c.b16 %v471, %v470
        %v497 = vpack.c.b16 %v473, %v472
        %v498 = vpack.c.b16 %v475, %v474
        %v499 = vpack.c.b16 %v477, %v476
        %v500 = vpack.c.b16 %v479, %v478
        %v501 = vpack.c.b16 %v481, %v480
        %v502 = vpack.c.b16 %v483, %v482
        %v503 = vpack.c.b16 %v485, %v484
        %v504 = vpack.c.b16 %v487, %v486
        %v505 = vpack.c.b16 %v489, %v488
        %v538 = vunpack.c.l.b16 %v410
        %v539 = vunpack.c.l.b16 %v411
        %v540 = vunpack.c.l.b16 %v412
        %v541 = vunpack.c.l.b16 %v413
        %v542 = vunpack.c.l.b16 %v414
        %v543 = vunpack.c.l.b16 %v415
        %v544 = vunpack.c.l.b16 %v416
        %v545 = vunpack.c.l.b16 %v417
        %v546 = vunpack.c.l.b16 %v418
        %v547 = vunpack.c.l.b16 %v419
        %v548 = vunpack.c.l.b16 %v420
        %v549 = vunpack.c.l.b16 %v421
        %v550 = vunpack.c.l.b16 %v422
        %v551 = vunpack.c.l.b16 %v423
        %v552 = vunpack.c.l.b16 %v424
        %v553 = vunpack.c.l.b16 %v425
        %v554 = vpack.c.b16 %v539, %v538
        %v555 = vpack.c.b16 %v541, %v540
        %v556 = vpack.c.b16 %v543, %v542
        %v557 = vpack.c.b16 %v545, %v544
        %v558 = vpack.c.b16 %v547, %v546
        %v559 = vpack.c.b16 %v549, %v548
        %v560 = vpack.c.b16 %v551, %v550
        %v561 = vpack.c.b16 %v553, %v552
        %570 = vmatprep.subr.bf16.mxu0 0
        %571 = vmatpush1.bf16.msra.mxu0 %v554
        %572 = vmatprep.subr.bf16.mxu0 0
        %573 = vmatpush1.bf16.msra.mxu0 %v555
        %574 = vmatprep.subr.bf16.mxu0 0
        %575 = vmatpush1.bf16.msra.mxu0 %v556
        %576 = vmatprep.subr.bf16.mxu0 0
        %577 = vmatpush1.bf16.msra.mxu0 %v557
        %578 = vmatprep.subr.bf16.mxu0 0
        %579 = vmatpush1.bf16.msra.mxu0 %v558
        %580 = vmatprep.subr.bf16.mxu0 0
        %581 = vmatpush1.bf16.msra.mxu0 %v559
        %582 = vmatprep.subr.bf16.mxu0 0
        %583 = vmatpush1.bf16.msra.mxu0 %v560
        %584 = vmatprep.subr.bf16.mxu0 0
        %585 = vmatpush1.bf16.msra.mxu0 %v561
        %586 = vmatprep.subr.bf16.mxu0 0
        %587 = vmatpush1.bf16.msra.mxu0 0
        %588 = vmatprep.subr.bf16.mxu0 0
        %589 = vmatpush1.bf16.msra.mxu0 0
        %590 = vmatprep.subr.bf16.mxu0 0
        %591 = vmatpush1.bf16.msra.mxu0 0
        %592 = vmatprep.subr.bf16.mxu0 0
        %593 = vmatpush1.bf16.msra.mxu0 0
        %594 = vmatprep.subr.bf16.mxu0 0
        %595 = vmatpush1.bf16.msra.mxu0 0
        %596 = vmatprep.subr.bf16.mxu0 0
        %597 = vmatpush1.bf16.msra.mxu0 0
        %598 = vmatprep.subr.bf16.mxu0 0
        %599 = vmatpush1.bf16.msra.mxu0 0
        %600 = vmatprep.subr.bf16.mxu0 0
        %601 = vmatpush1.bf16.msra.mxu0 0
        %602 = vmatprep.mubr.bf16.mxu0 0
        %603 = vmatmul.mubr.bf16.gmra.mrb[0].mxu0 %v490
        %v604 = vpop.f32.mrb[0].mxu0
        %v605 = vadd.f32 0.0, %v604
        %v606 = vpop.f32.mrb[0].mxu0
        %v607 = vpop.f32.mrb[0].mxu0
        %v608 = vadd.f32 0.0, %v607
        %v609 = vpop.f32.mrb[0].mxu0
        %610 = vmatprep.mubr.bf16.mxu0 0
        %611 = vmatmul.mubr.bf16.gmra.mrb[0].mxu0 %v491
        %v612 = vpop.f32.mrb[0].mxu0
        %v613 = vadd.f32 0.0, %v612
        %v614 = vpop.f32.mrb[0].mxu0
        %v615 = vpop.f32.mrb[0].mxu0
        %v616 = vadd.f32 0.0, %v615
        %v617 = vpop.f32.mrb[0].mxu0
        %618 = vmatprep.mubr.bf16.mxu0 0
        %619 = vmatmul.mubr.bf16.gmra.mrb[0].mxu0 %v492
        %v620 = vpop.f32.mrb[0].mxu0
        %v621 = vadd.f32 0.0, %v620
        %v622 = vpop.f32.mrb[0].mxu0
        %v623 = vpop.f32.mrb[0].mxu0
        %v624 = vadd.f32 0.0, %v623
        %v625 = vpop.f32.mrb[0].mxu0
        %626 = vmatprep.mubr.bf16.mxu0 0
        %627 = vmatmul.mubr.bf16.gmra.mrb[0].mxu0 %v493
        %v628 = vpop.f32.mrb[0].mxu0
        %v629 = vadd.f32 0.0, %v628
        %v630 = vpop.f32.mrb[0].mxu0
        %v631 = vpop.f32.mrb[0].mxu0
        %v632 = vadd.f32 0.0, %v631
        %v633 = vpop.f32.mrb[0].mxu0
        %634 = vmatprep.mubr.bf16.mxu0 0
        %635 = vmatmul.mubr.bf16.gmra.mrb[0].mxu0 %v494
        %v636 = vpop.f32.mrb[0].mxu0
        %v637 = vadd.f32 0.0, %v636
        %v638 = vpop.f32.mrb[0].mxu0
        %v639 = vpop.f32.mrb[0].mxu0
        %v640 = vadd.f32 0.0, %v639
        %v641 = vpop.f32.mrb[0].mxu0
        %642 = vmatprep.mubr.bf16.mxu0 0
        %643 = vmatmul.mubr.bf16.gmra.mrb[0].mxu0 %v495
        %v644 = vpop.f32.mrb[0].mxu0
        %v645 = vadd.f32 0.0, %v644
        %v646 = vpop.f32.mrb[0].mxu0
        %v647 = vpop.f32.mrb[0].mxu0
        %v648 = vadd.f32 0.0, %v647
        %v649 = vpop.f32.mrb[0].mxu0
        %650 = vmatprep.mubr.bf16.mxu0 0
        %651 = vmatmul.mubr.bf16.gmra.mrb[0].mxu0 %v496
        %v652 = vpop.f32.mrb[0].mxu0
        %v653 = vadd.f32 0.0, %v652
        %v654 = vpop.f32.mrb[0].mxu0
        %v655 = vpop.f32.mrb[0].mxu0
        %v656 = vadd.f32 0.0, %v655
        %v657 = vpop.f32.mrb[0].mxu0
        %658 = vmatprep.mubr.bf16.mxu0 0
        %659 = vmatmul.mubr.bf16.gmra.mrb[0].mxu0 %v497
        %v660 = vpop.f32.mrb[0].mxu0
        %v661 = vadd.f32 0.0, %v660
        %v662 = vpop.f32.mrb[0].mxu0
        %v663 = vpop.f32.mrb[0].mxu0
        %v664 = vadd.f32 0.0, %v663
        %v665 = vpop.f32.mrb[0].mxu0
        %666 = vmatprep.mubr.bf16.mxu0 0
        %667 = vmatmul.mubr.bf16.gmra.mrb[0].mxu0 %v498
        %v668 = vpop.f32.mrb[0].mxu0
        %v669 = vadd.f32 0.0, %v668
        %v670 = vpop.f32.mrb[0].mxu0
        %v671 = vpop.f32.mrb[0].mxu0
        %v672 = vadd.f32 0.0, %v671
        %v673 = vpop.f32.mrb[0].mxu0
        %674 = vmatprep.mubr.bf16.mxu0 0
        %675 = vmatmul.mubr.bf16.gmra.mrb[0].mxu0 %v499
        %v676 = vpop.f32.mrb[0].mxu0
        %v677 = vadd.f32 0.0, %v676
        %v678 = vpop.f32.mrb[0].mxu0
        %v679 = vpop.f32.mrb[0].mxu0
        %v680 = vadd.f32 0.0, %v679
        %v681 = vpop.f32.mrb[0].mxu0
        %682 = vmatprep.mubr.bf16.mxu0 0
        %683 = vmatmul.mubr.bf16.gmra.mrb[0].mxu0 %v500
        %v684 = vpop.f32.mrb[0].mxu0
        %v685 = vadd.f32 0.0, %v684
        %v686 = vpop.f32.mrb[0].mxu0
        %v687 = vpop.f32.mrb[0].mxu0
        %v688 = vadd.f32 0.0, %v687
        %v689 = vpop.f32.mrb[0].mxu0
        %690 = vmatprep.mubr.bf16.mxu0 0
        %691 = vmatmul.mubr.bf16.gmra.mrb[0].mxu0 %v501
        %v692 = vpop.f32.mrb[0].mxu0
        %v693 = vadd.f32 0.0, %v692
        %v694 = vpop.f32.mrb[0].mxu0
        %v695 = vpop.f32.mrb[0].mxu0
        %v696 = vadd.f32 0.0, %v695
        %v697 = vpop.f32.mrb[0].mxu0
        %698 = vmatprep.mubr.bf16.mxu0 0
        %699 = vmatmul.mubr.bf16.gmra.mrb[0].mxu0 %v502
        %v700 = vpop.f32.mrb[0].mxu0
        %v701 = vadd.f32 0.0, %v700
        %v702 = vpop.f32.mrb[0].mxu0
        %v703 = vpop.f32.mrb[0].mxu0
        %v704 = vadd.f32 0.0, %v703
        %v705 = vpop.f32.mrb[0].mxu0
        %706 = vmatprep.mubr.bf16.mxu0 0
        %707 = vmatmul.mubr.bf16.gmra.mrb[0].mxu0 %v503
        %v708 = vpop.f32.mrb[0].mxu0
        %v709 = vadd.f32 0.0, %v708
        %v710 = vpop.f32.mrb[0].mxu0
        %v711 = vpop.f32.mrb[0].mxu0
        %v712 = vadd.f32 0.0, %v711
        %v713 = vpop.f32.mrb[0].mxu0
        %714 = vmatprep.mubr.bf16.mxu0 0
        %715 = vmatmul.mubr.bf16.gmra.mrb[0].mxu0 %v504
        %v716 = vpop.f32.mrb[0].mxu0
        %v717 = vadd.f32 0.0, %v716
        %v718 = vpop.f32.mrb[0].mxu0
        %v719 = vpop.f32.mrb[0].mxu0
        %v720 = vadd.f32 0.0, %v719
        %v721 = vpop.f32.mrb[0].mxu0
        %722 = vmatprep.mubr.bf16.mxu0 0
        %723 = vmatmul.mubr.bf16.gmra.mrb[0].mxu0 %v505
        %v724 = vpop.f32.mrb[0].mxu0
        %v725 = vadd.f32 0.0, %v724
        %v726 = vpop.f32.mrb[0].mxu0
        %v727 = vpop.f32.mrb[0].mxu0
        %v728 = vadd.f32 0.0, %v727
        %v729 = vpop.f32.mrb[0].mxu0
        %730 = vdwg.mxu0
        %v731 = vld [vmem:[%s326] sm:$0xf]
        %v732 = vld [vmem:[#allocation8] sm:$0xf]
        %v733 = vld [vmem:[#allocation8 + $0x4] sm:$0xf]
        %v734 = vld [vmem:[#allocation8 + $0x8] sm:$0xf]
        %v735 = vld [vmem:[#allocation8 + $0xc] sm:$0xf]
        %v736 = vld [vmem:[#allocation8 + $0x10] sm:$0xf]
        %v737 = vld [vmem:[#allocation8 + $0x14] sm:$0xf]
        %v738 = vld [vmem:[#allocation8 + $0x18] sm:$0xf]
        %v739 = vld [vmem:[#allocation8 + $0x1c] sm:$0xf]
        %v740 = vld [vmem:[#allocation8 + $0x20] sm:$0xf]
        %v741 = vld [vmem:[#allocation8 + $0x24] sm:$0xf]
        %v742 = vld [vmem:[#allocation8 + $0x28] sm:$0xf]
        %v743 = vld [vmem:[#allocation8 + $0x2c] sm:$0xf]
        %v744 = vld [vmem:[#allocation8 + $0x30] sm:$0xf]
        %v745 = vld [vmem:[#allocation8 + $0x34] sm:$0xf]
        %v746 = vld [vmem:[#allocation8 + $0x38] sm:$0xf]
        %v747 = vld [vmem:[#allocation8 + $0x3c] sm:$0xf]
        %v748 = vld [vmem:[%s4] sm:$0x1]
        %v750 = vlaneseq
        %v751 = vshrl.u32 %v750, 7
        %v752 = vsub.s32 0, %v751
        %v753 = vrot.slane %v748, %v752
        %v771 = vunpack.c.l.b16 %v732
        %v772 = vunpack.c.l.b16 %v733
        %v773 = vunpack.c.l.b16 %v734
        %v774 = vunpack.c.l.b16 %v735
        %v775 = vunpack.c.l.b16 %v736
        %v776 = vunpack.c.l.b16 %v737
        %v777 = vunpack.c.l.b16 %v738
        %v778 = vunpack.c.l.b16 %v739
        %v779 = vunpack.c.l.b16 %v740
        %v780 = vunpack.c.l.b16 %v741
        %v781 = vunpack.c.l.b16 %v742
        %v782 = vunpack.c.l.b16 %v743
        %v783 = vunpack.c.l.b16 %v744
        %v784 = vunpack.c.l.b16 %v745
        %v785 = vunpack.c.l.b16 %v746
        %v786 = vunpack.c.l.b16 %v747
        %v787 = vpack.c.b16 %v772, %v771
        %v788 = vpack.c.b16 %v774, %v773
        %v789 = vpack.c.b16 %v776, %v775
        %v790 = vpack.c.b16 %v778, %v777
        %v791 = vpack.c.b16 %v780, %v779
        %v792 = vpack.c.b16 %v782, %v781
        %v793 = vpack.c.b16 %v784, %v783
        %v794 = vpack.c.b16 %v786, %v785
        %803 = vmatprep.subr.bf16.mxu0 0
        %804 = vmatpush1.bf16.msra.mxu0 %v787
        %805 = vmatprep.subr.bf16.mxu0 0
        %806 = vmatpush1.bf16.msra.mxu0 %v788
        %807 = vmatprep.subr.bf16.mxu0 0
        %808 = vmatpush1.bf16.msra.mxu0 %v789
        %809 = vmatprep.subr.bf16.mxu0 0
        %810 = vmatpush1.bf16.msra.mxu0 %v790
        %811 = vmatprep.subr.bf16.mxu0 0
        %812 = vmatpush1.bf16.msra.mxu0 %v791
        %813 = vmatprep.subr.bf16.mxu0 0
        %814 = vmatpush1.bf16.msra.mxu0 %v792
        %815 = vmatprep.subr.bf16.mxu0 0
        %816 = vmatpush1.bf16.msra.mxu0 %v793
        %817 = vmatprep.subr.bf16.mxu0 0
        %818 = vmatpush1.bf16.msra.mxu0 %v794
        %819 = vmatprep.subr.bf16.mxu0 0
        %820 = vmatpush1.bf16.msra.mxu0 0
        %821 = vmatprep.subr.bf16.mxu0 0
        %822 = vmatpush1.bf16.msra.mxu0 0
        %823 = vmatprep.subr.bf16.mxu0 0
        %824 = vmatpush1.bf16.msra.mxu0 0
        %825 = vmatprep.subr.bf16.mxu0 0
        %826 = vmatpush1.bf16.msra.mxu0 0
        %827 = vmatprep.subr.bf16.mxu0 0
        %828 = vmatpush1.bf16.msra.mxu0 0
        %829 = vmatprep.subr.bf16.mxu0 0
        %830 = vmatpush1.bf16.msra.mxu0 0
        %831 = vmatprep.subr.bf16.mxu0 0
        %832 = vmatpush1.bf16.msra.mxu0 0
        %833 = vmatprep.subr.bf16.mxu0 0
        %834 = vmatpush1.bf16.msra.mxu0 0
        %835 = vmatprep.mubr.bf16.mxu0 0
        %836 = vmatmul.mubr.bf16.gmra.mrb[0].mxu0 %v731
        %v837 = vpop.f32.mrb[0].mxu0
        %v838 = vadd.f32 %v753, %v837
        %v839 = vpop.f32.mrb[0].mxu0
        %v840 = vpop.f32.mrb[0].mxu0
        %v841 = vpop.f32.mrb[0].mxu0
        %842 = vdwg.mxu0
        %v844 = vcombine.high %v838, %v838
        %v846 = vunpack.c.l.s4 1966171168
        %v847 = vunpack.c.0.s8 %v846
        %v848 = vlaneseq
        %v849 = vshrl.u32 %v848, 7
        %v850 = vsub.s32 %v847, %v849
        %v851 = vrot.slane %v838, %v850
        %v853 = vunpack.c.l.s4 1966171168
        %v854 = vunpack.c.0.s8 %v853
        %v855 = vlaneseq
        %v856 = vshrl.u32 %v855, 7
        %v857 = vsub.s32 %v854, %v856
        %v858 = vrot.slane %v844, %v857
        %v859 = vcombine.high %v851, %v851
        %v860 = vcombine.high %v858, %v858
        %v862 = vunpack.c.l.s4 1966171168
        %v863 = vunpack.c.0.s8 %v862
        %v864 = vlaneseq
        %v865 = vshrl.u32 %v864, 7
        %v866 = vsub.s32 %v863, %v865
        %v867 = vrot.slane %v851, %v866
        %v869 = vunpack.c.l.s4 1966171168
        %v870 = vunpack.c.0.s8 %v869
        %v871 = vlaneseq
        %v872 = vshrl.u32 %v871, 7
        %v873 = vsub.s32 %v870, %v872
        %v874 = vrot.slane %v858, %v873
        %v876 = vunpack.c.l.s4 1966171168
        %v877 = vunpack.c.0.s8 %v876
        %v878 = vlaneseq
        %v879 = vshrl.u32 %v878, 7
        %v880 = vsub.s32 %v877, %v879
        %v881 = vrot.slane %v859, %v880
        %v883 = vunpack.c.l.s4 1966171168
        %v884 = vunpack.c.0.s8 %v883
        %v885 = vlaneseq
        %v886 = vshrl.u32 %v885, 7
        %v887 = vsub.s32 %v884, %v886
        %v888 = vrot.slane %v860, %v887
        %v889 = vcombine.high %v867, %v867
        %v890 = vcombine.high %v874, %v874
        %v891 = vcombine.high %v881, %v881
        %v892 = vcombine.high %v888, %v888
        %v893 = vlaneseq
        %v894 = vshrl.u32 %v893, 7
        %v895 = vsub.s32 0, %v894
        %v896 = vrot.slane %v867, %v895
        %v897 = vlaneseq
        %v898 = vshrl.u32 %v897, 7
        %v899 = vsub.s32 0, %v898
        %v900 = vrot.slane %v881, %v899
        %v901 = vlaneseq
        %v902 = vshrl.u32 %v901, 7
        %v903 = vsub.s32 0, %v902
        %v904 = vrot.slane %v889, %v903
        %v905 = vlaneseq
        %v906 = vshrl.u32 %v905, 7
        %v907 = vsub.s32 0, %v906
        %v908 = vrot.slane %v891, %v907
        %v909 = vlaneseq
        %v910 = vshrl.u32 %v909, 7
        %v911 = vsub.s32 0, %v910
        %v912 = vrot.slane %v874, %v911
        %v913 = vlaneseq
        %v914 = vshrl.u32 %v913, 7
        %v915 = vsub.s32 0, %v914
        %v916 = vrot.slane %v888, %v915
        %v917 = vlaneseq
        %v918 = vshrl.u32 %v917, 7
        %v919 = vsub.s32 0, %v918
        %v920 = vrot.slane %v890, %v919
        %v921 = vlaneseq
        %v922 = vshrl.u32 %v921, 7
        %v923 = vsub.s32 0, %v922
        %v924 = vrot.slane %v892, %v923
        %v933 = vadd.f32 %v605, %v896
        %v934 = vadd.f32 %v608, %v896
        %v935 = vadd.f32 %v613, %v896
        %v936 = vadd.f32 %v616, %v896
        %v937 = vadd.f32 %v621, %v900
        %v938 = vadd.f32 %v624, %v900
        %v939 = vadd.f32 %v629, %v900
        %v940 = vadd.f32 %v632, %v900
        %v941 = vadd.f32 %v637, %v904
        %v942 = vadd.f32 %v640, %v904
        %v943 = vadd.f32 %v645, %v904
        %v944 = vadd.f32 %v648, %v904
        %v945 = vadd.f32 %v653, %v908
        %v946 = vadd.f32 %v656, %v908
        %v947 = vadd.f32 %v661, %v908
        %v948 = vadd.f32 %v664, %v908
        %v949 = vadd.f32 %v669, %v912
        %v950 = vadd.f32 %v672, %v912
        %v951 = vadd.f32 %v677, %v912
        %v952 = vadd.f32 %v680, %v912
        %v953 = vadd.f32 %v685, %v916
        %v954 = vadd.f32 %v688, %v916
        %v955 = vadd.f32 %v693, %v916
        %v956 = vadd.f32 %v696, %v916
        %v957 = vadd.f32 %v701, %v920
        %v958 = vadd.f32 %v704, %v920
        %v959 = vadd.f32 %v709, %v920
        %v960 = vadd.f32 %v712, %v920
        %v961 = vadd.f32 %v717, %v924
        %v962 = vadd.f32 %v720, %v924
        %v963 = vadd.f32 %v725, %v924
        %v964 = vadd.f32 %v728, %v924
        %v965 = vmax.f32 %v933, 0.0
        %v966 = vmax.f32 %v934, 0.0
        %v967 = vmax.f32 %v935, 0.0
        %v968 = vmax.f32 %v936, 0.0
        %v969 = vmax.f32 %v937, 0.0
        %v970 = vmax.f32 %v938, 0.0
        %v971 = vmax.f32 %v939, 0.0
        %v972 = vmax.f32 %v940, 0.0
        %v973 = vmax.f32 %v941, 0.0
        %v974 = vmax.f32 %v942, 0.0
        %v975 = vmax.f32 %v943, 0.0
        %v976 = vmax.f32 %v944, 0.0
        %v977 = vmax.f32 %v945, 0.0
        %v978 = vmax.f32 %v946, 0.0
        %v979 = vmax.f32 %v947, 0.0
        %v980 = vmax.f32 %v948, 0.0
        %v981 = vmax.f32 %v949, 0.0
        %v982 = vmax.f32 %v950, 0.0
        %v983 = vmax.f32 %v951, 0.0
        %v984 = vmax.f32 %v952, 0.0
        %v985 = vmax.f32 %v953, 0.0
        %v986 = vmax.f32 %v954, 0.0
        %v987 = vmax.f32 %v955, 0.0
        %v988 = vmax.f32 %v956, 0.0
        %v989 = vmax.f32 %v957, 0.0
        %v990 = vmax.f32 %v958, 0.0
        %v991 = vmax.f32 %v959, 0.0
        %v992 = vmax.f32 %v960, 0.0
        %v993 = vmax.f32 %v961, 0.0
        %v994 = vmax.f32 %v962, 0.0
        %v995 = vmax.f32 %v963, 0.0
        %v996 = vmax.f32 %v964, 0.0
        %v997 = vld [vmem:[%s5] sm:$0x1]
        %v999 = vlaneseq
        %v1000 = vshrl.u32 %v999, 7
        %v1001 = vsub.s32 0, %v1000
        %v1002 = vrot.slane %v997, %v1001
        %v1004 = vmul.f32 %v965, %v1002
        %v1005 = vmul.f32 %v966, %v1002
        %v1006 = vmul.f32 %v967, %v1002
        %v1007 = vmul.f32 %v968, %v1002
        %v1008 = vmul.f32 %v969, %v1002
        %v1009 = vmul.f32 %v970, %v1002
        %v1010 = vmul.f32 %v971, %v1002
        %v1011 = vmul.f32 %v972, %v1002
        %v1012 = vmul.f32 %v973, %v1002
        %v1013 = vmul.f32 %v974, %v1002
        %v1014 = vmul.f32 %v975, %v1002
        %v1015 = vmul.f32 %v976, %v1002
        %v1016 = vmul.f32 %v977, %v1002
        %v1017 = vmul.f32 %v978, %v1002
        %v1018 = vmul.f32 %v979, %v1002
        %v1019 = vmul.f32 %v980, %v1002
        %v1020 = vmul.f32 %v981, %v1002
        %v1021 = vmul.f32 %v982, %v1002
        %v1022 = vmul.f32 %v983, %v1002
        %v1023 = vmul.f32 %v984, %v1002
        %v1024 = vmul.f32 %v985, %v1002
        %v1025 = vmul.f32 %v986, %v1002
        %v1026 = vmul.f32 %v987, %v1002
        %v1027 = vmul.f32 %v988, %v1002
        %v1028 = vmul.f32 %v989, %v1002
        %v1029 = vmul.f32 %v990, %v1002
        %v1030 = vmul.f32 %v991, %v1002
        %v1031 = vmul.f32 %v992, %v1002
        %v1032 = vmul.f32 %v993, %v1002
        %v1033 = vmul.f32 %v994, %v1002
        %v1034 = vmul.f32 %v995, %v1002
        %v1035 = vmul.f32 %v996, %v1002
        %1036 = vadd.xlane.f32.xlu0 %v1004
        %v1037 = vpop.xlane.xlu0 %1036
        %1038 = vadd.xlane.f32.xlu0 %v1005
        %v1039 = vpop.xlane.xlu0 %1038
        %1040 = vadd.xlane.f32.xlu0 %v1006
        %v1041 = vpop.xlane.xlu0 %1040
        %1042 = vadd.xlane.f32.xlu0 %v1007
        %v1043 = vpop.xlane.xlu0 %1042
        %1044 = vadd.xlane.f32.xlu0 %v1008
        %v1045 = vpop.xlane.xlu0 %1044
        %1046 = vadd.xlane.f32.xlu0 %v1009
        %v1047 = vpop.xlane.xlu0 %1046
        %1048 = vadd.xlane.f32.xlu0 %v1010
        %v1049 = vpop.xlane.xlu0 %1048
        %1050 = vadd.xlane.f32.xlu0 %v1011
        %v1051 = vpop.xlane.xlu0 %1050
        %1052 = vadd.xlane.f32.xlu0 %v1012
        %v1053 = vpop.xlane.xlu0 %1052
        %1054 = vadd.xlane.f32.xlu0 %v1013
        %v1055 = vpop.xlane.xlu0 %1054
        %1056 = vadd.xlane.f32.xlu0 %v1014
        %v1057 = vpop.xlane.xlu0 %1056
        %1058 = vadd.xlane.f32.xlu0 %v1015
        %v1059 = vpop.xlane.xlu0 %1058
        %1060 = vadd.xlane.f32.xlu0 %v1016
        %v1061 = vpop.xlane.xlu0 %1060
        %1062 = vadd.xlane.f32.xlu0 %v1017
        %v1063 = vpop.xlane.xlu0 %1062
        %1064 = vadd.xlane.f32.xlu0 %v1018
        %v1065 = vpop.xlane.xlu0 %1064
        %1066 = vadd.xlane.f32.xlu0 %v1019
        %v1067 = vpop.xlane.xlu0 %1066
        %1068 = vadd.xlane.f32.xlu0 %v1020
        %v1069 = vpop.xlane.xlu0 %1068
        %1070 = vadd.xlane.f32.xlu0 %v1021
        %v1071 = vpop.xlane.xlu0 %1070
        %1072 = vadd.xlane.f32.xlu0 %v1022
        %v1073 = vpop.xlane.xlu0 %1072
        %1074 = vadd.xlane.f32.xlu0 %v1023
        %v1075 = vpop.xlane.xlu0 %1074
        %1076 = vadd.xlane.f32.xlu0 %v1024
        %v1077 = vpop.xlane.xlu0 %1076
        %1078 = vadd.xlane.f32.xlu0 %v1025
        %v1079 = vpop.xlane.xlu0 %1078
        %1080 = vadd.xlane.f32.xlu0 %v1026
        %v1081 = vpop.xlane.xlu0 %1080
        %1082 = vadd.xlane.f32.xlu0 %v1027
        %v1083 = vpop.xlane.xlu0 %1082
        %1084 = vadd.xlane.f32.xlu0 %v1028
        %v1085 = vpop.xlane.xlu0 %1084
        %1086 = vadd.xlane.f32.xlu0 %v1029
        %v1087 = vpop.xlane.xlu0 %1086
        %1088 = vadd.xlane.f32.xlu0 %v1030
        %v1089 = vpop.xlane.xlu0 %1088
        %1090 = vadd.xlane.f32.xlu0 %v1031
        %v1091 = vpop.xlane.xlu0 %1090
        %1092 = vadd.xlane.f32.xlu0 %v1032
        %v1093 = vpop.xlane.xlu0 %1092
        %1094 = vadd.xlane.f32.xlu0 %v1033
        %v1095 = vpop.xlane.xlu0 %1094
        %1096 = vadd.xlane.f32.xlu0 %v1034
        %v1097 = vpop.xlane.xlu0 %1096
        %1098 = vadd.xlane.f32.xlu0 %v1035
        %v1099 = vpop.xlane.xlu0 %1098
        %v1132 = vlaneseq
        %v1133 = vand.u32 %v1132, 127
        %v1134 = vlaneseq
        %v1135 = vshrl.u32 %v1134, 7
        %v1136 = vsub.s32 %v1133, %v1135
        %v1137 = vrot.slane %v1037, %v1136
        %v1138 = vadd.s32 %v1133, 4294967288
        %v1139 = vlaneseq
        %v1140 = vshrl.u32 %v1139, 7
        %v1141 = vsub.s32 %v1138, %v1140
        %v1142 = vrot.slane %v1039, %v1141
        %vm1143 = vcmask 130112
        %v1144 = vsel %vm1143, %v1142, %v1137
        %v1145 = vadd.s32 %v1133, 4294967280
        %v1146 = vlaneseq
        %v1147 = vshrl.u32 %v1146, 7
        %v1148 = vsub.s32 %v1145, %v1147
        %v1149 = vrot.slane %v1041, %v1148
        %vm1150 = vcmask 195712
        %v1151 = vsel %vm1150, %v1149, %v1144
        %v1152 = vadd.s32 %v1133, 4294967272
        %v1153 = vlaneseq
        %v1154 = vshrl.u32 %v1153, 7
        %v1155 = vsub.s32 %v1152, %v1154
        %v1156 = vrot.slane %v1043, %v1155
        %vm1157 = vcmask 261312
        %v1158 = vsel %vm1157, %v1156, %v1151
        %v1159 = vlaneseq
        %v1160 = vshrl.u32 %v1159, 7
        %v1161 = vsub.s32 %v1133, %v1160
        %v1162 = vrot.slane %v1045, %v1161
        %v1163 = vlaneseq
        %v1164 = vshrl.u32 %v1163, 7
        %v1165 = vsub.s32 %v1138, %v1164
        %v1166 = vrot.slane %v1047, %v1165
        %v1167 = vsel %vm1143, %v1166, %v1162
        %v1168 = vlaneseq
        %v1169 = vshrl.u32 %v1168, 7
        %v1170 = vsub.s32 %v1145, %v1169
        %v1171 = vrot.slane %v1049, %v1170
        %v1172 = vsel %vm1150, %v1171, %v1167
        %v1173 = vlaneseq
        %v1174 = vshrl.u32 %v1173, 7
        %v1175 = vsub.s32 %v1152, %v1174
        %v1176 = vrot.slane %v1051, %v1175
        %v1177 = vsel %vm1157, %v1176, %v1172
        %v1178 = vlaneseq
        %v1179 = vshrl.u32 %v1178, 7
        %v1180 = vsub.s32 %v1133, %v1179
        %v1181 = vrot.slane %v1053, %v1180
        %v1182 = vlaneseq
        %v1183 = vshrl.u32 %v1182, 7
        %v1184 = vsub.s32 %v1138, %v1183
        %v1185 = vrot.slane %v1055, %v1184
        %v1186 = vsel %vm1143, %v1185, %v1181
        %v1187 = vlaneseq
        %v1188 = vshrl.u32 %v1187, 7
        %v1189 = vsub.s32 %v1145, %v1188
        %v1190 = vrot.slane %v1057, %v1189
        %v1191 = vsel %vm1150, %v1190, %v1186
        %v1192 = vlaneseq
        %v1193 = vshrl.u32 %v1192, 7
        %v1194 = vsub.s32 %v1152, %v1193
        %v1195 = vrot.slane %v1059, %v1194
        %v1196 = vsel %vm1157, %v1195, %v1191
        %v1197 = vlaneseq
        %v1198 = vshrl.u32 %v1197, 7
        %v1199 = vsub.s32 %v1133, %v1198
        %v1200 = vrot.slane %v1061, %v1199
        %v1201 = vlaneseq
        %v1202 = vshrl.u32 %v1201, 7
        %v1203 = vsub.s32 %v1138, %v1202
        %v1204 = vrot.slane %v1063, %v1203
        %v1205 = vsel %vm1143, %v1204, %v1200
        %v1206 = vlaneseq
        %v1207 = vshrl.u32 %v1206, 7
        %v1208 = vsub.s32 %v1145, %v1207
        %v1209 = vrot.slane %v1065, %v1208
        %v1210 = vsel %vm1150, %v1209, %v1205
        %v1211 = vlaneseq
        %v1212 = vshrl.u32 %v1211, 7
        %v1213 = vsub.s32 %v1152, %v1212
        %v1214 = vrot.slane %v1067, %v1213
        %v1215 = vsel %vm1157, %v1214, %v1210
        %v1216 = vlaneseq
        %v1217 = vshrl.u32 %v1216, 7
        %v1218 = vsub.s32 %v1133, %v1217
        %v1219 = vrot.slane %v1069, %v1218
        %v1220 = vlaneseq
        %v1221 = vshrl.u32 %v1220, 7
        %v1222 = vsub.s32 %v1138, %v1221
        %v1223 = vrot.slane %v1071, %v1222
        %v1224 = vsel %vm1143, %v1223, %v1219
        %v1225 = vlaneseq
        %v1226 = vshrl.u32 %v1225, 7
        %v1227 = vsub.s32 %v1145, %v1226
        %v1228 = vrot.slane %v1073, %v1227
        %v1229 = vsel %vm1150, %v1228, %v1224
        %v1230 = vlaneseq
        %v1231 = vshrl.u32 %v1230, 7
        %v1232 = vsub.s32 %v1152, %v1231
        %v1233 = vrot.slane %v1075, %v1232
        %v1234 = vsel %vm1157, %v1233, %v1229
        %v1235 = vlaneseq
        %v1236 = vshrl.u32 %v1235, 7
        %v1237 = vsub.s32 %v1133, %v1236
        %v1238 = vrot.slane %v1077, %v1237
        %v1239 = vlaneseq
        %v1240 = vshrl.u32 %v1239, 7
        %v1241 = vsub.s32 %v1138, %v1240
        %v1242 = vrot.slane %v1079, %v1241
        %v1243 = vsel %vm1143, %v1242, %v1238
        %v1244 = vlaneseq
        %v1245 = vshrl.u32 %v1244, 7
        %v1246 = vsub.s32 %v1145, %v1245
        %v1247 = vrot.slane %v1081, %v1246
        %v1248 = vsel %vm1150, %v1247, %v1243
        %v1249 = vlaneseq
        %v1250 = vshrl.u32 %v1249, 7
        %v1251 = vsub.s32 %v1152, %v1250
        %v1252 = vrot.slane %v1083, %v1251
        %v1253 = vsel %vm1157, %v1252, %v1248
        %v1254 = vlaneseq
        %v1255 = vshrl.u32 %v1254, 7
        %v1256 = vsub.s32 %v1133, %v1255
        %v1257 = vrot.slane %v1085, %v1256
        %v1258 = vlaneseq
        %v1259 = vshrl.u32 %v1258, 7
        %v1260 = vsub.s32 %v1138, %v1259
        %v1261 = vrot.slane %v1087, %v1260
        %v1262 = vsel %vm1143, %v1261, %v1257
        %v1263 = vlaneseq
        %v1264 = vshrl.u32 %v1263, 7
        %v1265 = vsub.s32 %v1145, %v1264
        %v1266 = vrot.slane %v1089, %v1265
        %v1267 = vsel %vm1150, %v1266, %v1262
        %v1268 = vlaneseq
        %v1269 = vshrl.u32 %v1268, 7
        %v1270 = vsub.s32 %v1152, %v1269
        %v1271 = vrot.slane %v1091, %v1270
        %v1272 = vsel %vm1157, %v1271, %v1267
        %v1273 = vlaneseq
        %v1274 = vshrl.u32 %v1273, 7
        %v1275 = vsub.s32 %v1133, %v1274
        %v1276 = vrot.slane %v1093, %v1275
        %v1277 = vlaneseq
        %v1278 = vshrl.u32 %v1277, 7
        %v1279 = vsub.s32 %v1138, %v1278
        %v1280 = vrot.slane %v1095, %v1279
        %v1281 = vsel %vm1143, %v1280, %v1276
        %v1282 = vlaneseq
        %v1283 = vshrl.u32 %v1282, 7
        %v1284 = vsub.s32 %v1145, %v1283
        %v1285 = vrot.slane %v1097, %v1284
        %v1286 = vsel %vm1150, %v1285, %v1281
        %v1287 = vlaneseq
        %v1288 = vshrl.u32 %v1287, 7
        %v1289 = vsub.s32 %v1152, %v1288
        %v1290 = vrot.slane %v1099, %v1289
        %v1291 = vsel %vm1157, %v1290, %v1286
        %vm1292 = vcmask 1041409
        %v1293 = vsel %vm1292, %v1177, %v1158
        %vm1294 = vcmask 1042434
        %v1295 = vsel %vm1294, %v1196, %v1293
        %vm1296 = vcmask 1043459
        %v1297 = vsel %vm1296, %v1215, %v1295
        %vm1298 = vcmask 1044484
        %v1299 = vsel %vm1298, %v1234, %v1297
        %vm1300 = vcmask 1045509
        %v1301 = vsel %vm1300, %v1253, %v1299
        %vm1302 = vcmask 1046534
        %v1303 = vsel %vm1302, %v1272, %v1301
        %vm1304 = vcmask 1047559
        %v1305 = vsel %vm1304, %v1291, %v1303
        %vm1307 = vcmask 261120
        %v1308 = vsel %vm1307, %v1305, -inf
        %1309 = vmax.xlane.f32.xlu0 %v1308
        %v1310 = vpop.xlane.xlu0 %1309
        %v1312 = vlaneseq
        %v1313 = vshrl.u32 %v1312, 7
        %v1314 = vsub.s32 0, %v1313
        %v1315 = vrot.slane %v1310, %v1314
        %v1316 = vlaneseq
        %v1317 = vshrl.u32 %v1316, 7
        %v1318 = vsub.s32 1, %v1317
        %v1319 = vrot.slane %v1310, %v1318
        %v1320 = vlaneseq
        %v1321 = vshrl.u32 %v1320, 7
        %v1322 = vsub.s32 2, %v1321
        %v1323 = vrot.slane %v1310, %v1322
        %v1324 = vlaneseq
        %v1325 = vshrl.u32 %v1324, 7
        %v1326 = vsub.s32 3, %v1325
        %v1327 = vrot.slane %v1310, %v1326
        %v1328 = vlaneseq
        %v1329 = vshrl.u32 %v1328, 7
        %v1330 = vsub.s32 4, %v1329
        %v1331 = vrot.slane %v1310, %v1330
        %v1332 = vlaneseq
        %v1333 = vshrl.u32 %v1332, 7
        %v1334 = vsub.s32 5, %v1333
        %v1335 = vrot.slane %v1310, %v1334
        %v1336 = vlaneseq
        %v1337 = vshrl.u32 %v1336, 7
        %v1338 = vsub.s32 6, %v1337
        %v1339 = vrot.slane %v1310, %v1338
        %v1340 = vlaneseq
        %v1341 = vshrl.u32 %v1340, 7
        %v1342 = vsub.s32 7, %v1341
        %v1343 = vrot.slane %v1310, %v1342
        %v1352 = vsub.f32 %v1037, %v1315
        %v1353 = vsub.f32 %v1039, %v1315
        %v1354 = vsub.f32 %v1041, %v1315
        %v1355 = vsub.f32 %v1043, %v1315
        %v1356 = vsub.f32 %v1045, %v1319
        %v1357 = vsub.f32 %v1047, %v1319
        %v1358 = vsub.f32 %v1049, %v1319
        %v1359 = vsub.f32 %v1051, %v1319
        %v1360 = vsub.f32 %v1053, %v1323
        %v1361 = vsub.f32 %v1055, %v1323
        %v1362 = vsub.f32 %v1057, %v1323
        %v1363 = vsub.f32 %v1059, %v1323
        %v1364 = vsub.f32 %v1061, %v1327
        %v1365 = vsub.f32 %v1063, %v1327
        %v1366 = vsub.f32 %v1065, %v1327
        %v1367 = vsub.f32 %v1067, %v1327
        %v1368 = vsub.f32 %v1069, %v1331
        %v1369 = vsub.f32 %v1071, %v1331
        %v1370 = vsub.f32 %v1073, %v1331
        %v1371 = vsub.f32 %v1075, %v1331
        %v1372 = vsub.f32 %v1077, %v1335
        %v1373 = vsub.f32 %v1079, %v1335
        %v1374 = vsub.f32 %v1081, %v1335
        %v1375 = vsub.f32 %v1083, %v1335
        %v1376 = vsub.f32 %v1085, %v1339
        %v1377 = vsub.f32 %v1087, %v1339
        %v1378 = vsub.f32 %v1089, %v1339
        %v1379 = vsub.f32 %v1091, %v1339
        %v1380 = vsub.f32 %v1093, %v1343
        %v1381 = vsub.f32 %v1095, %v1343
        %v1382 = vsub.f32 %v1097, %v1343
        %v1383 = vsub.f32 %v1099, %v1343
        %v1384 = vmul.f32 %v1352, 1.442695
        %v1385 = vpow.pop %v1384
        %v1386 = vmul.f32 %v1353, 1.442695
        %v1387 = vpow.pop %v1386
        %v1388 = vmul.f32 %v1354, 1.442695
        %v1389 = vpow.pop %v1388
        %v1390 = vmul.f32 %v1355, 1.442695
        %v1391 = vpow.pop %v1390
        %v1392 = vmul.f32 %v1356, 1.442695
        %v1393 = vpow.pop %v1392
        %v1394 = vmul.f32 %v1357, 1.442695
        %v1395 = vpow.pop %v1394
        %v1396 = vmul.f32 %v1358, 1.442695
        %v1397 = vpow.pop %v1396
        %v1398 = vmul.f32 %v1359, 1.442695
        %v1399 = vpow.pop %v1398
        %v1400 = vmul.f32 %v1360, 1.442695
        %v1401 = vpow.pop %v1400
        %v1402 = vmul.f32 %v1361, 1.442695
        %v1403 = vpow.pop %v1402
        %v1404 = vmul.f32 %v1362, 1.442695
        %v1405 = vpow.pop %v1404
        %v1406 = vmul.f32 %v1363, 1.442695
        %v1407 = vpow.pop %v1406
        %v1408 = vmul.f32 %v1364, 1.442695
        %v1409 = vpow.pop %v1408
        %v1410 = vmul.f32 %v1365, 1.442695
        %v1411 = vpow.pop %v1410
        %v1412 = vmul.f32 %v1366, 1.442695
        %v1413 = vpow.pop %v1412
        %v1414 = vmul.f32 %v1367, 1.442695
        %v1415 = vpow.pop %v1414
        %v1416 = vmul.f32 %v1368, 1.442695
        %v1417 = vpow.pop %v1416
        %v1418 = vmul.f32 %v1369, 1.442695
        %v1419 = vpow.pop %v1418
        %v1420 = vmul.f32 %v1370, 1.442695
        %v1421 = vpow.pop %v1420
        %v1422 = vmul.f32 %v1371, 1.442695
        %v1423 = vpow.pop %v1422
        %v1424 = vmul.f32 %v1372, 1.442695
        %v1425 = vpow.pop %v1424
        %v1426 = vmul.f32 %v1373, 1.442695
        %v1427 = vpow.pop %v1426
        %v1428 = vmul.f32 %v1374, 1.442695
        %v1429 = vpow.pop %v1428
        %v1430 = vmul.f32 %v1375, 1.442695
        %v1431 = vpow.pop %v1430
        %v1432 = vmul.f32 %v1376, 1.442695
        %v1433 = vpow.pop %v1432
        %v1434 = vmul.f32 %v1377, 1.442695
        %v1435 = vpow.pop %v1434
        %v1436 = vmul.f32 %v1378, 1.442695
        %v1437 = vpow.pop %v1436
        %v1438 = vmul.f32 %v1379, 1.442695
        %v1439 = vpow.pop %v1438
        %v1440 = vmul.f32 %v1380, 1.442695
        %v1441 = vpow.pop %v1440
        %v1442 = vmul.f32 %v1381, 1.442695
        %v1443 = vpow.pop %v1442
        %v1444 = vmul.f32 %v1382, 1.442695
        %v1445 = vpow.pop %v1444
        %v1446 = vmul.f32 %v1383, 1.442695
        %v1447 = vpow.pop %v1446
        %1480 = vset.pattern.permute.xlu0 0
        %1481 = vperm.xlu0 %1480, %v1385
        %v1482 = vpop.permute.xlu0 %1481
        %1483 = vset.pattern.permute.xlu0 0
        %1484 = vperm.xlu0 %1483, %v1387
        %v1485 = vpop.permute.xlu0 %1484
        %1486 = vset.pattern.permute.xlu0 0
        %1487 = vperm.xlu0 %1486, %v1389
        %v1488 = vpop.permute.xlu0 %1487
        %1489 = vset.pattern.permute.xlu0 0
        %1490 = vperm.xlu0 %1489, %v1391
        %v1491 = vpop.permute.xlu0 %1490
        %1492 = vset.pattern.permute.xlu0 0
        %1493 = vperm.xlu0 %1492, %v1393
        %v1494 = vpop.permute.xlu0 %1493
        %1495 = vset.pattern.permute.xlu0 0
        %1496 = vperm.xlu0 %1495, %v1395
        %v1497 = vpop.permute.xlu0 %1496
        %1498 = vset.pattern.permute.xlu0 0
        %1499 = vperm.xlu0 %1498, %v1397
        %v1500 = vpop.permute.xlu0 %1499
        %1501 = vset.pattern.permute.xlu0 0
        %1502 = vperm.xlu0 %1501, %v1399
        %v1503 = vpop.permute.xlu0 %1502
        %1504 = vset.pattern.permute.xlu0 0
        %1505 = vperm.xlu0 %1504, %v1401
        %v1506 = vpop.permute.xlu0 %1505
        %1507 = vset.pattern.permute.xlu0 0
        %1508 = vperm.xlu0 %1507, %v1403
        %v1509 = vpop.permute.xlu0 %1508
        %1510 = vset.pattern.permute.xlu0 0
        %1511 = vperm.xlu0 %1510, %v1405
        %v1512 = vpop.permute.xlu0 %1511
        %1513 = vset.pattern.permute.xlu0 0
        %1514 = vperm.xlu0 %1513, %v1407
        %v1515 = vpop.permute.xlu0 %1514
        %1516 = vset.pattern.permute.xlu0 0
        %1517 = vperm.xlu0 %1516, %v1409
        %v1518 = vpop.permute.xlu0 %1517
        %1519 = vset.pattern.permute.xlu0 0
        %1520 = vperm.xlu0 %1519, %v1411
        %v1521 = vpop.permute.xlu0 %1520
        %1522 = vset.pattern.permute.xlu0 0
        %1523 = vperm.xlu0 %1522, %v1413
        %v1524 = vpop.permute.xlu0 %1523
        %1525 = vset.pattern.permute.xlu0 0
        %1526 = vperm.xlu0 %1525, %v1415
        %v1527 = vpop.permute.xlu0 %1526
        %1528 = vset.pattern.permute.xlu0 0
        %1529 = vperm.xlu0 %1528, %v1417
        %v1530 = vpop.permute.xlu0 %1529
        %1531 = vset.pattern.permute.xlu0 0
        %1532 = vperm.xlu0 %1531, %v1419
        %v1533 = vpop.permute.xlu0 %1532
        %1534 = vset.pattern.permute.xlu0 0
        %1535 = vperm.xlu0 %1534, %v1421
        %v1536 = vpop.permute.xlu0 %1535
        %1537 = vset.pattern.permute.xlu0 0
        %1538 = vperm.xlu0 %1537, %v1423
        %v1539 = vpop.permute.xlu0 %1538
        %1540 = vset.pattern.permute.xlu0 0
        %1541 = vperm.xlu0 %1540, %v1425
        %v1542 = vpop.permute.xlu0 %1541
        %1543 = vset.pattern.permute.xlu0 0
        %1544 = vperm.xlu0 %1543, %v1427
        %v1545 = vpop.permute.xlu0 %1544
        %1546 = vset.pattern.permute.xlu0 0
        %1547 = vperm.xlu0 %1546, %v1429
        %v1548 = vpop.permute.xlu0 %1547
        %1549 = vset.pattern.permute.xlu0 0
        %1550 = vperm.xlu0 %1549, %v1431
        %v1551 = vpop.permute.xlu0 %1550
        %1552 = vset.pattern.permute.xlu0 0
        %1553 = vperm.xlu0 %1552, %v1433
        %v1554 = vpop.permute.xlu0 %1553
        %1555 = vset.pattern.permute.xlu0 0
        %1556 = vperm.xlu0 %1555, %v1435
        %v1557 = vpop.permute.xlu0 %1556
        %1558 = vset.pattern.permute.xlu0 0
        %1559 = vperm.xlu0 %1558, %v1437
        %v1560 = vpop.permute.xlu0 %1559
        %1561 = vset.pattern.permute.xlu0 0
        %1562 = vperm.xlu0 %1561, %v1439
        %v1563 = vpop.permute.xlu0 %1562
        %1564 = vset.pattern.permute.xlu0 0
        %1565 = vperm.xlu0 %1564, %v1441
        %v1566 = vpop.permute.xlu0 %1565
        %1567 = vset.pattern.permute.xlu0 0
        %1568 = vperm.xlu0 %1567, %v1443
        %v1569 = vpop.permute.xlu0 %1568
        %1570 = vset.pattern.permute.xlu0 0
        %1571 = vperm.xlu0 %1570, %v1445
        %v1572 = vpop.permute.xlu0 %1571
        %1573 = vset.pattern.permute.xlu0 0
        %1574 = vperm.xlu0 %1573, %v1447
        %v1575 = vpop.permute.xlu0 %1574
        %v1576 = vlaneseq
        %v1577 = vshrl.u32 %v1576, 7
        %v1578 = vsub.s32 %v1133, %v1577
        %v1579 = vrot.slane %v1482, %v1578
        %v1580 = vlaneseq
        %v1581 = vshrl.u32 %v1580, 7
        %v1582 = vsub.s32 %v1138, %v1581
        %v1583 = vrot.slane %v1485, %v1582
        %v1584 = vsel %vm1143, %v1583, %v1579
        %v1585 = vlaneseq
        %v1586 = vshrl.u32 %v1585, 7
        %v1587 = vsub.s32 %v1145, %v1586
        %v1588 = vrot.slane %v1488, %v1587
        %v1589 = vsel %vm1150, %v1588, %v1584
        %v1590 = vlaneseq
        %v1591 = vshrl.u32 %v1590, 7
        %v1592 = vsub.s32 %v1152, %v1591
        %v1593 = vrot.slane %v1491, %v1592
        %v1594 = vsel %vm1157, %v1593, %v1589
        %v1595 = vlaneseq
        %v1596 = vshrl.u32 %v1595, 7
        %v1597 = vsub.s32 %v1133, %v1596
        %v1598 = vrot.slane %v1494, %v1597
        %v1599 = vlaneseq
        %v1600 = vshrl.u32 %v1599, 7
        %v1601 = vsub.s32 %v1138, %v1600
        %v1602 = vrot.slane %v1497, %v1601
        %v1603 = vsel %vm1143, %v1602, %v1598
        %v1604 = vlaneseq
        %v1605 = vshrl.u32 %v1604, 7
        %v1606 = vsub.s32 %v1145, %v1605
        %v1607 = vrot.slane %v1500, %v1606
        %v1608 = vsel %vm1150, %v1607, %v1603
        %v1609 = vlaneseq
        %v1610 = vshrl.u32 %v1609, 7
        %v1611 = vsub.s32 %v1152, %v1610
        %v1612 = vrot.slane %v1503, %v1611
        %v1613 = vsel %vm1157, %v1612, %v1608
        %v1614 = vlaneseq
        %v1615 = vshrl.u32 %v1614, 7
        %v1616 = vsub.s32 %v1133, %v1615
        %v1617 = vrot.slane %v1506, %v1616
        %v1618 = vlaneseq
        %v1619 = vshrl.u32 %v1618, 7
        %v1620 = vsub.s32 %v1138, %v1619
        %v1621 = vrot.slane %v1509, %v1620
        %v1622 = vsel %vm1143, %v1621, %v1617
        %v1623 = vlaneseq
        %v1624 = vshrl.u32 %v1623, 7
        %v1625 = vsub.s32 %v1145, %v1624
        %v1626 = vrot.slane %v1512, %v1625
        %v1627 = vsel %vm1150, %v1626, %v1622
        %v1628 = vlaneseq
        %v1629 = vshrl.u32 %v1628, 7
        %v1630 = vsub.s32 %v1152, %v1629
        %v1631 = vrot.slane %v1515, %v1630
        %v1632 = vsel %vm1157, %v1631, %v1627
        %v1633 = vlaneseq
        %v1634 = vshrl.u32 %v1633, 7
        %v1635 = vsub.s32 %v1133, %v1634
        %v1636 = vrot.slane %v1518, %v1635
        %v1637 = vlaneseq
        %v1638 = vshrl.u32 %v1637, 7
        %v1639 = vsub.s32 %v1138, %v1638
        %v1640 = vrot.slane %v1521, %v1639
        %v1641 = vsel %vm1143, %v1640, %v1636
        %v1642 = vlaneseq
        %v1643 = vshrl.u32 %v1642, 7
        %v1644 = vsub.s32 %v1145, %v1643
        %v1645 = vrot.slane %v1524, %v1644
        %v1646 = vsel %vm1150, %v1645, %v1641
        %v1647 = vlaneseq
        %v1648 = vshrl.u32 %v1647, 7
        %v1649 = vsub.s32 %v1152, %v1648
        %v1650 = vrot.slane %v1527, %v1649
        %v1651 = vsel %vm1157, %v1650, %v1646
        %v1652 = vlaneseq
        %v1653 = vshrl.u32 %v1652, 7
        %v1654 = vsub.s32 %v1133, %v1653
        %v1655 = vrot.slane %v1530, %v1654
        %v1656 = vlaneseq
        %v1657 = vshrl.u32 %v1656, 7
        %v1658 = vsub.s32 %v1138, %v1657
        %v1659 = vrot.slane %v1533, %v1658
        %v1660 = vsel %vm1143, %v1659, %v1655
        %v1661 = vlaneseq
        %v1662 = vshrl.u32 %v1661, 7
        %v1663 = vsub.s32 %v1145, %v1662
        %v1664 = vrot.slane %v1536, %v1663
        %v1665 = vsel %vm1150, %v1664, %v1660
        %v1666 = vlaneseq
        %v1667 = vshrl.u32 %v1666, 7
        %v1668 = vsub.s32 %v1152, %v1667
        %v1669 = vrot.slane %v1539, %v1668
        %v1670 = vsel %vm1157, %v1669, %v1665
        %v1671 = vlaneseq
        %v1672 = vshrl.u32 %v1671, 7
        %v1673 = vsub.s32 %v1133, %v1672
        %v1674 = vrot.slane %v1542, %v1673
        %v1675 = vlaneseq
        %v1676 = vshrl.u32 %v1675, 7
        %v1677 = vsub.s32 %v1138, %v1676
        %v1678 = vrot.slane %v1545, %v1677
        %v1679 = vsel %vm1143, %v1678, %v1674
        %v1680 = vlaneseq
        %v1681 = vshrl.u32 %v1680, 7
        %v1682 = vsub.s32 %v1145, %v1681
        %v1683 = vrot.slane %v1548, %v1682
        %v1684 = vsel %vm1150, %v1683, %v1679
        %v1685 = vlaneseq
        %v1686 = vshrl.u32 %v1685, 7
        %v1687 = vsub.s32 %v1152, %v1686
        %v1688 = vrot.slane %v1551, %v1687
        %v1689 = vsel %vm1157, %v1688, %v1684
        %v1690 = vlaneseq
        %v1691 = vshrl.u32 %v1690, 7
        %v1692 = vsub.s32 %v1133, %v1691
        %v1693 = vrot.slane %v1554, %v1692
        %v1694 = vlaneseq
        %v1695 = vshrl.u32 %v1694, 7
        %v1696 = vsub.s32 %v1138, %v1695
        %v1697 = vrot.slane %v1557, %v1696
        %v1698 = vsel %vm1143, %v1697, %v1693
        %v1699 = vlaneseq
        %v1700 = vshrl.u32 %v1699, 7
        %v1701 = vsub.s32 %v1145, %v1700
        %v1702 = vrot.slane %v1560, %v1701
        %v1703 = vsel %vm1150, %v1702, %v1698
        %v1704 = vlaneseq
        %v1705 = vshrl.u32 %v1704, 7
        %v1706 = vsub.s32 %v1152, %v1705
        %v1707 = vrot.slane %v1563, %v1706
        %v1708 = vsel %vm1157, %v1707, %v1703
        %v1709 = vlaneseq
        %v1710 = vshrl.u32 %v1709, 7
        %v1711 = vsub.s32 %v1133, %v1710
        %v1712 = vrot.slane %v1566, %v1711
        %v1713 = vlaneseq
        %v1714 = vshrl.u32 %v1713, 7
        %v1715 = vsub.s32 %v1138, %v1714
        %v1716 = vrot.slane %v1569, %v1715
        %v1717 = vsel %vm1143, %v1716, %v1712
        %v1718 = vlaneseq
        %v1719 = vshrl.u32 %v1718, 7
        %v1720 = vsub.s32 %v1145, %v1719
        %v1721 = vrot.slane %v1572, %v1720
        %v1722 = vsel %vm1150, %v1721, %v1717
        %v1723 = vlaneseq
        %v1724 = vshrl.u32 %v1723, 7
        %v1725 = vsub.s32 %v1152, %v1724
        %v1726 = vrot.slane %v1575, %v1725
        %v1727 = vsel %vm1157, %v1726, %v1722
        %v1728 = vsel %vm1292, %v1613, %v1594
        %v1729 = vsel %vm1294, %v1632, %v1728
        %v1730 = vsel %vm1296, %v1651, %v1729
        %v1731 = vsel %vm1298, %v1670, %v1730
        %v1732 = vsel %vm1300, %v1689, %v1731
        %v1733 = vsel %vm1302, %v1708, %v1732
        %v1734 = vsel %vm1304, %v1727, %v1733
        %v1736 = vsel %vm1307, %v1734, 0.0
        %1737 = vadd.xlane.f32.xlu0 %v1736
        %v1738 = vpop.xlane.xlu0 %1737
        %v1739 = vrcp.pop %v1738
        %v1741 = vlaneseq
        %v1742 = vshrl.u32 %v1741, 7
        %v1743 = vsub.s32 0, %v1742
        %v1744 = vrot.slane %v1739, %v1743
        %v1745 = vlaneseq
        %v1746 = vshrl.u32 %v1745, 7
        %v1747 = vsub.s32 1, %v1746
        %v1748 = vrot.slane %v1739, %v1747
        %v1749 = vlaneseq
        %v1750 = vshrl.u32 %v1749, 7
        %v1751 = vsub.s32 2, %v1750
        %v1752 = vrot.slane %v1739, %v1751
        %v1753 = vlaneseq
        %v1754 = vshrl.u32 %v1753, 7
        %v1755 = vsub.s32 3, %v1754
        %v1756 = vrot.slane %v1739, %v1755
        %v1757 = vlaneseq
        %v1758 = vshrl.u32 %v1757, 7
        %v1759 = vsub.s32 4, %v1758
        %v1760 = vrot.slane %v1739, %v1759
        %v1761 = vlaneseq
        %v1762 = vshrl.u32 %v1761, 7
        %v1763 = vsub.s32 5, %v1762
        %v1764 = vrot.slane %v1739, %v1763
        %v1765 = vlaneseq
        %v1766 = vshrl.u32 %v1765, 7
        %v1767 = vsub.s32 6, %v1766
        %v1768 = vrot.slane %v1739, %v1767
        %v1769 = vlaneseq
        %v1770 = vshrl.u32 %v1769, 7
        %v1771 = vsub.s32 7, %v1770
        %v1772 = vrot.slane %v1739, %v1771
        %v1781 = vmul.f32 %v1385, %v1744
        %v1782 = vmul.f32 %v1387, %v1744
        %v1783 = vmul.f32 %v1389, %v1744
        %v1784 = vmul.f32 %v1391, %v1744
        %v1785 = vmul.f32 %v1393, %v1748
        %v1786 = vmul.f32 %v1395, %v1748
        %v1787 = vmul.f32 %v1397, %v1748
        %v1788 = vmul.f32 %v1399, %v1748
        %v1789 = vmul.f32 %v1401, %v1752
        %v1790 = vmul.f32 %v1403, %v1752
        %v1791 = vmul.f32 %v1405, %v1752
        %v1792 = vmul.f32 %v1407, %v1752
        %v1793 = vmul.f32 %v1409, %v1756
        %v1794 = vmul.f32 %v1411, %v1756
        %v1795 = vmul.f32 %v1413, %v1756
        %v1796 = vmul.f32 %v1415, %v1756
        %v1797 = vmul.f32 %v1417, %v1760
        %v1798 = vmul.f32 %v1419, %v1760
        %v1799 = vmul.f32 %v1421, %v1760
        %v1800 = vmul.f32 %v1423, %v1760
        %v1801 = vmul.f32 %v1425, %v1764
        %v1802 = vmul.f32 %v1427, %v1764
        %v1803 = vmul.f32 %v1429, %v1764
        %v1804 = vmul.f32 %v1431, %v1764
        %v1805 = vmul.f32 %v1433, %v1768
        %v1806 = vmul.f32 %v1435, %v1768
        %v1807 = vmul.f32 %v1437, %v1768
        %v1808 = vmul.f32 %v1439, %v1768
        %v1809 = vmul.f32 %v1441, %v1772
        %v1810 = vmul.f32 %v1443, %v1772
        %v1811 = vmul.f32 %v1445, %v1772
        %v1812 = vmul.f32 %v1447, %v1772
        %v1813 = vpack.c.bf16 %v1782, %v1781
        %v1814 = vpack.c.bf16 %v1784, %v1783
        %v1815 = vpack.c.bf16 %v1786, %v1785
        %v1816 = vpack.c.bf16 %v1788, %v1787
        %v1817 = vpack.c.bf16 %v1790, %v1789
        %v1818 = vpack.c.bf16 %v1792, %v1791
        %v1819 = vpack.c.bf16 %v1794, %v1793
        %v1820 = vpack.c.bf16 %v1796, %v1795
        %v1821 = vpack.c.bf16 %v1798, %v1797
        %v1822 = vpack.c.bf16 %v1800, %v1799
        %v1823 = vpack.c.bf16 %v1802, %v1801
        %v1824 = vpack.c.bf16 %v1804, %v1803
        %v1825 = vpack.c.bf16 %v1806, %v1805
        %v1826 = vpack.c.bf16 %v1808, %v1807
        %v1827 = vpack.c.bf16 %v1810, %v1809
        %v1828 = vpack.c.bf16 %v1812, %v1811
        %v1831 = vunpack.c.l.b16 %v1813
        %v1832 = vunpack.c.h.b16 %v1813
        %v1833 = vunpack.c.l.b16 %v1814
        %v1834 = vunpack.c.h.b16 %v1814
        %1835 = vset.pattern.permute.xlu0 0
        %1836 = vperm.xlu0 %1835, %v1831
        %v1837 = vpop.permute.xlu0 %1836
        %1838 = vset.pattern.permute.xlu0 0
        %1839 = vperm.xlu0 %1838, %v1832
        %v1840 = vpop.permute.xlu0 %1839
        %1841 = vset.pattern.permute.xlu0 0
        %1842 = vperm.xlu0 %1841, %v1833
        %v1843 = vpop.permute.xlu0 %1842
        %1844 = vset.pattern.permute.xlu0 0
        %1845 = vperm.xlu0 %1844, %v1834
        %v1846 = vpop.permute.xlu0 %1845
        %v1847 = vlaneseq
        %v1848 = vshrl.u32 %v1847, 7
        %v1849 = vsub.s32 %v1133, %v1848
        %v1850 = vrot.slane %v1837, %v1849
        %v1851 = vlaneseq
        %v1852 = vshrl.u32 %v1851, 7
        %v1853 = vsub.s32 %v1138, %v1852
        %v1854 = vrot.slane %v1840, %v1853
        %v1855 = vsel %vm1143, %v1854, %v1850
        %v1856 = vlaneseq
        %v1857 = vshrl.u32 %v1856, 7
        %v1858 = vsub.s32 %v1145, %v1857
        %v1859 = vrot.slane %v1843, %v1858
        %v1860 = vsel %vm1150, %v1859, %v1855
        %v1861 = vlaneseq
        %v1862 = vshrl.u32 %v1861, 7
        %v1863 = vsub.s32 %v1152, %v1862
        %v1864 = vrot.slane %v1846, %v1863
        %v1865 = vsel %vm1157, %v1864, %v1860
        %v1866 = vpack.c.b16 %v1865, %v1865
        %v1868 = vsel %vm1307, %v1866, 0
        %1870 = vmatprep.subr.bf16.mxu0 0
        %1871 = vmatpush1.bf16.msra.mxu0 %v490
        %1872 = vmatprep.subr.bf16.mxu0 0
        %1873 = vmatpush1.bf16.msra.mxu0 %v491
        %1874 = vmatprep.subr.bf16.mxu0 0
        %1875 = vmatpush1.bf16.msra.mxu0 0
        %1876 = vmatprep.subr.bf16.mxu0 0
        %1877 = vmatpush1.bf16.msra.mxu0 0
        %1878 = vmatprep.subr.bf16.mxu0 0
        %1879 = vmatpush1.bf16.msra.mxu0 0
        %1880 = vmatprep.subr.bf16.mxu0 0
        %1881 = vmatpush1.bf16.msra.mxu0 0
        %1882 = vmatprep.subr.bf16.mxu0 0
        %1883 = vmatpush1.bf16.msra.mxu0 0
        %1884 = vmatprep.subr.bf16.mxu0 0
        %1885 = vmatpush1.bf16.msra.mxu0 0
        %1886 = vmatprep.subr.bf16.mxu0 0
        %1887 = vmatpush1.bf16.msra.mxu0 0
        %1888 = vmatprep.subr.bf16.mxu0 0
        %1889 = vmatpush1.bf16.msra.mxu0 0
        %1890 = vmatprep.subr.bf16.mxu0 0
        %1891 = vmatpush1.bf16.msra.mxu0 0
        %1892 = vmatprep.subr.bf16.mxu0 0
        %1893 = vmatpush1.bf16.msra.mxu0 0
        %1894 = vmatprep.subr.bf16.mxu0 0
        %1895 = vmatpush1.bf16.msra.mxu0 0
        %1896 = vmatprep.subr.bf16.mxu0 0
        %1897 = vmatpush1.bf16.msra.mxu0 0
        %1898 = vmatprep.subr.bf16.mxu0 0
        %1899 = vmatpush1.bf16.msra.mxu0 0
        %1900 = vmatprep.subr.bf16.mxu0 0
        %1901 = vmatpush1.bf16.msra.mxu0 0
        %1902 = vmatprep.mubr.bf16.mxu0 0
        %1903 = vmatmul.mubr.bf16.gmra.mrb[0].mxu0 %v1868
        %v1904 = vpop.f32.mrb[0].mxu0
        %v1905 = vadd.f32 0.0, %v1904
        %v1906 = vpop.f32.mrb[0].mxu0
        %v1907 = vpop.f32.mrb[0].mxu0
        %v1908 = vpop.f32.mrb[0].mxu0
        %1909 = vdwg.mxu0
        %v1912 = vunpack.c.l.b16 %v1815
        %v1913 = vunpack.c.h.b16 %v1815
        %v1914 = vunpack.c.l.b16 %v1816
        %v1915 = vunpack.c.h.b16 %v1816
        %1916 = vset.pattern.permute.xlu0 0
        %1917 = vperm.xlu0 %1916, %v1912
        %v1918 = vpop.permute.xlu0 %1917
        %1919 = vset.pattern.permute.xlu0 0
        %1920 = vperm.xlu0 %1919, %v1913
        %v1921 = vpop.permute.xlu0 %1920
        %1922 = vset.pattern.permute.xlu0 0
        %1923 = vperm.xlu0 %1922, %v1914
        %v1924 = vpop.permute.xlu0 %1923
        %1925 = vset.pattern.permute.xlu0 0
        %1926 = vperm.xlu0 %1925, %v1915
        %v1927 = vpop.permute.xlu0 %1926
        %v1928 = vlaneseq
        %v1929 = vshrl.u32 %v1928, 7
        %v1930 = vsub.s32 %v1133, %v1929
        %v1931 = vrot.slane %v1918, %v1930
        %v1932 = vlaneseq
        %v1933 = vshrl.u32 %v1932, 7
        %v1934 = vsub.s32 %v1138, %v1933
        %v1935 = vrot.slane %v1921, %v1934
        %v1936 = vsel %vm1143, %v1935, %v1931
        %v1937 = vlaneseq
        %v1938 = vshrl.u32 %v1937, 7
        %v1939 = vsub.s32 %v1145, %v1938
        %v1940 = vrot.slane %v1924, %v1939
        %v1941 = vsel %vm1150, %v1940, %v1936
        %v1942 = vlaneseq
        %v1943 = vshrl.u32 %v1942, 7
        %v1944 = vsub.s32 %v1152, %v1943
        %v1945 = vrot.slane %v1927, %v1944
        %v1946 = vsel %vm1157, %v1945, %v1941
        %v1947 = vpack.c.b16 %v1946, %v1946
        %v1949 = vsel %vm1307, %v1947, 0
        %1951 = vmatprep.subr.bf16.mxu0 0
        %1952 = vmatpush1.bf16.msra.mxu0 %v492
        %1953 = vmatprep.subr.bf16.mxu0 0
        %1954 = vmatpush1.bf16.msra.mxu0 %v493
        %1955 = vmatprep.subr.bf16.mxu0 0
        %1956 = vmatpush1.bf16.msra.mxu0 0
        %1957 = vmatprep.subr.bf16.mxu0 0
        %1958 = vmatpush1.bf16.msra.mxu0 0
        %1959 = vmatprep.subr.bf16.mxu0 0
        %1960 = vmatpush1.bf16.msra.mxu0 0
        %1961 = vmatprep.subr.bf16.mxu0 0
        %1962 = vmatpush1.bf16.msra.mxu0 0
        %1963 = vmatprep.subr.bf16.mxu0 0
        %1964 = vmatpush1.bf16.msra.mxu0 0
        %1965 = vmatprep.subr.bf16.mxu0 0
        %1966 = vmatpush1.bf16.msra.mxu0 0
        %1967 = vmatprep.subr.bf16.mxu0 0
        %1968 = vmatpush1.bf16.msra.mxu0 0
        %1969 = vmatprep.subr.bf16.mxu0 0
        %1970 = vmatpush1.bf16.msra.mxu0 0
        %1971 = vmatprep.subr.bf16.mxu0 0
        %1972 = vmatpush1.bf16.msra.mxu0 0
        %1973 = vmatprep.subr.bf16.mxu0 0
        %1974 = vmatpush1.bf16.msra.mxu0 0
        %1975 = vmatprep.subr.bf16.mxu0 0
        %1976 = vmatpush1.bf16.msra.mxu0 0
        %1977 = vmatprep.subr.bf16.mxu0 0
        %1978 = vmatpush1.bf16.msra.mxu0 0
        %1979 = vmatprep.subr.bf16.mxu0 0
        %1980 = vmatpush1.bf16.msra.mxu0 0
        %1981 = vmatprep.subr.bf16.mxu0 0
        %1982 = vmatpush1.bf16.msra.mxu0 0
        %1983 = vmatprep.mubr.bf16.mxu0 0
        %1984 = vmatmul.mubr.bf16.gmra.mrb[0].mxu0 %v1949
        %v1985 = vpop.f32.mrb[0].mxu0
        %v1986 = vadd.f32 0.0, %v1985
        %v1987 = vpop.f32.mrb[0].mxu0
        %v1988 = vpop.f32.mrb[0].mxu0
        %v1989 = vpop.f32.mrb[0].mxu0
        %1990 = vdwg.mxu0
        %v1993 = vunpack.c.l.b16 %v1817
        %v1994 = vunpack.c.h.b16 %v1817
        %v1995 = vunpack.c.l.b16 %v1818
        %v1996 = vunpack.c.h.b16 %v1818
        %1997 = vset.pattern.permute.xlu0 0
        %1998 = vperm.xlu0 %1997, %v1993
        %v1999 = vpop.permute.xlu0 %1998
        %2000 = vset.pattern.permute.xlu0 0
        %2001 = vperm.xlu0 %2000, %v1994
        %v2002 = vpop.permute.xlu0 %2001
        %2003 = vset.pattern.permute.xlu0 0
        %2004 = vperm.xlu0 %2003, %v1995
        %v2005 = vpop.permute.xlu0 %2004
        %2006 = vset.pattern.permute.xlu0 0
        %2007 = vperm.xlu0 %2006, %v1996
        %v2008 = vpop.permute.xlu0 %2007
        %v2009 = vlaneseq
        %v2010 = vshrl.u32 %v2009, 7
        %v2011 = vsub.s32 %v1133, %v2010
        %v2012 = vrot.slane %v1999, %v2011
        %v2013 = vlaneseq
        %v2014 = vshrl.u32 %v2013, 7
        %v2015 = vsub.s32 %v1138, %v2014
        %v2016 = vrot.slane %v2002, %v2015
        %v2017 = vsel %vm1143, %v2016, %v2012
        %v2018 = vlaneseq
        %v2019 = vshrl.u32 %v2018, 7
        %v2020 = vsub.s32 %v1145, %v2019
        %v2021 = vrot.slane %v2005, %v2020
        %v2022 = vsel %vm1150, %v2021, %v2017
        %v2023 = vlaneseq
        %v2024 = vshrl.u32 %v2023, 7
        %v2025 = vsub.s32 %v1152, %v2024
        %v2026 = vrot.slane %v2008, %v2025
        %v2027 = vsel %vm1157, %v2026, %v2022
        %v2028 = vpack.c.b16 %v2027, %v2027
        %v2030 = vsel %vm1307, %v2028, 0
        %2032 = vmatprep.subr.bf16.mxu0 0
        %2033 = vmatpush1.bf16.msra.mxu0 %v494
        %2034 = vmatprep.subr.bf16.mxu0 0
        %2035 = vmatpush1.bf16.msra.mxu0 %v495
        %2036 = vmatprep.subr.bf16.mxu0 0
        %2037 = vmatpush1.bf16.msra.mxu0 0
        %2038 = vmatprep.subr.bf16.mxu0 0
        %2039 = vmatpush1.bf16.msra.mxu0 0
        %2040 = vmatprep.subr.bf16.mxu0 0
        %2041 = vmatpush1.bf16.msra.mxu0 0
        %2042 = vmatprep.subr.bf16.mxu0 0
        %2043 = vmatpush1.bf16.msra.mxu0 0
        %2044 = vmatprep.subr.bf16.mxu0 0
        %2045 = vmatpush1.bf16.msra.mxu0 0
        %2046 = vmatprep.subr.bf16.mxu0 0
        %2047 = vmatpush1.bf16.msra.mxu0 0
        %2048 = vmatprep.subr.bf16.mxu0 0
        %2049 = vmatpush1.bf16.msra.mxu0 0
        %2050 = vmatprep.subr.bf16.mxu0 0
        %2051 = vmatpush1.bf16.msra.mxu0 0
        %2052 = vmatprep.subr.bf16.mxu0 0
        %2053 = vmatpush1.bf16.msra.mxu0 0
        %2054 = vmatprep.subr.bf16.mxu0 0
        %2055 = vmatpush1.bf16.msra.mxu0 0
        %2056 = vmatprep.subr.bf16.mxu0 0
        %2057 = vmatpush1.bf16.msra.mxu0 0
        %2058 = vmatprep.subr.bf16.mxu0 0
        %2059 = vmatpush1.bf16.msra.mxu0 0
        %2060 = vmatprep.subr.bf16.mxu0 0
        %2061 = vmatpush1.bf16.msra.mxu0 0
        %2062 = vmatprep.subr.bf16.mxu0 0
        %2063 = vmatpush1.bf16.msra.mxu0 0
        %2064 = vmatprep.mubr.bf16.mxu0 0
        %2065 = vmatmul.mubr.bf16.gmra.mrb[0].mxu0 %v2030
        %v2066 = vpop.f32.mrb[0].mxu0
        %v2067 = vadd.f32 0.0, %v2066
        %v2068 = vpop.f32.mrb[0].mxu0
        %v2069 = vpop.f32.mrb[0].mxu0
        %v2070 = vpop.f32.mrb[0].mxu0
        %2071 = vdwg.mxu0
        %v2074 = vunpack.c.l.b16 %v1819
        %v2075 = vunpack.c.h.b16 %v1819
        %v2076 = vunpack.c.l.b16 %v1820
        %v2077 = vunpack.c.h.b16 %v1820
        %2078 = vset.pattern.permute.xlu0 0
        %2079 = vperm.xlu0 %2078, %v2074
        %v2080 = vpop.permute.xlu0 %2079
        %2081 = vset.pattern.permute.xlu0 0
        %2082 = vperm.xlu0 %2081, %v2075
        %v2083 = vpop.permute.xlu0 %2082
        %2084 = vset.pattern.permute.xlu0 0
        %2085 = vperm.xlu0 %2084, %v2076
        %v2086 = vpop.permute.xlu0 %2085
        %2087 = vset.pattern.permute.xlu0 0
        %2088 = vperm.xlu0 %2087, %v2077
        %v2089 = vpop.permute.xlu0 %2088
        %v2090 = vlaneseq
        %v2091 = vshrl.u32 %v2090, 7
        %v2092 = vsub.s32 %v1133, %v2091
        %v2093 = vrot.slane %v2080, %v2092
        %v2094 = vlaneseq
        %v2095 = vshrl.u32 %v2094, 7
        %v2096 = vsub.s32 %v1138, %v2095
        %v2097 = vrot.slane %v2083, %v2096
        %v2098 = vsel %vm1143, %v2097, %v2093
        %v2099 = vlaneseq
        %v2100 = vshrl.u32 %v2099, 7
        %v2101 = vsub.s32 %v1145, %v2100
        %v2102 = vrot.slane %v2086, %v2101
        %v2103 = vsel %vm1150, %v2102, %v2098
        %v2104 = vlaneseq
        %v2105 = vshrl.u32 %v2104, 7
        %v2106 = vsub.s32 %v1152, %v2105
        %v2107 = vrot.slane %v2089, %v2106
        %v2108 = vsel %vm1157, %v2107, %v2103
        %v2109 = vpack.c.b16 %v2108, %v2108
        %v2111 = vsel %vm1307, %v2109, 0
        %2113 = vmatprep.subr.bf16.mxu0 0
        %2114 = vmatpush1.bf16.msra.mxu0 %v496
        %2115 = vmatprep.subr.bf16.mxu0 0
        %2116 = vmatpush1.bf16.msra.mxu0 %v497
        %2117 = vmatprep.subr.bf16.mxu0 0
        %2118 = vmatpush1.bf16.msra.mxu0 0
        %2119 = vmatprep.subr.bf16.mxu0 0
        %2120 = vmatpush1.bf16.msra.mxu0 0
        %2121 = vmatprep.subr.bf16.mxu0 0
        %2122 = vmatpush1.bf16.msra.mxu0 0
        %2123 = vmatprep.subr.bf16.mxu0 0
        %2124 = vmatpush1.bf16.msra.mxu0 0
        %2125 = vmatprep.subr.bf16.mxu0 0
        %2126 = vmatpush1.bf16.msra.mxu0 0
        %2127 = vmatprep.subr.bf16.mxu0 0
        %2128 = vmatpush1.bf16.msra.mxu0 0
        %2129 = vmatprep.subr.bf16.mxu0 0
        %2130 = vmatpush1.bf16.msra.mxu0 0
        %2131 = vmatprep.subr.bf16.mxu0 0
        %2132 = vmatpush1.bf16.msra.mxu0 0
        %2133 = vmatprep.subr.bf16.mxu0 0
        %2134 = vmatpush1.bf16.msra.mxu0 0
        %2135 = vmatprep.subr.bf16.mxu0 0
        %2136 = vmatpush1.bf16.msra.mxu0 0
        %2137 = vmatprep.subr.bf16.mxu0 0
        %2138 = vmatpush1.bf16.msra.mxu0 0
        %2139 = vmatprep.subr.bf16.mxu0 0
        %2140 = vmatpush1.bf16.msra.mxu0 0
        %2141 = vmatprep.subr.bf16.mxu0 0
        %2142 = vmatpush1.bf16.msra.mxu0 0
        %2143 = vmatprep.subr.bf16.mxu0 0
        %2144 = vmatpush1.bf16.msra.mxu0 0
        %2145 = vmatprep.mubr.bf16.mxu0 0
        %2146 = vmatmul.mubr.bf16.gmra.mrb[0].mxu0 %v2111
        %v2147 = vpop.f32.mrb[0].mxu0
        %v2148 = vadd.f32 0.0, %v2147
        %v2149 = vpop.f32.mrb[0].mxu0
        %v2150 = vpop.f32.mrb[0].mxu0
        %v2151 = vpop.f32.mrb[0].mxu0
        %2152 = vdwg.mxu0
        %v2155 = vunpack.c.l.b16 %v1821
        %v2156 = vunpack.c.h.b16 %v1821
        %v2157 = vunpack.c.l.b16 %v1822
        %v2158 = vunpack.c.h.b16 %v1822
        %2159 = vset.pattern.permute.xlu0 0
        %2160 = vperm.xlu0 %2159, %v2155
        %v2161 = vpop.permute.xlu0 %2160
        %2162 = vset.pattern.permute.xlu0 0
        %2163 = vperm.xlu0 %2162, %v2156
        %v2164 = vpop.permute.xlu0 %2163
        %2165 = vset.pattern.permute.xlu0 0
        %2166 = vperm.xlu0 %2165, %v2157
        %v2167 = vpop.permute.xlu0 %2166
        %2168 = vset.pattern.permute.xlu0 0
        %2169 = vperm.xlu0 %2168, %v2158
        %v2170 = vpop.permute.xlu0 %2169
        %v2171 = vlaneseq
        %v2172 = vshrl.u32 %v2171, 7
        %v2173 = vsub.s32 %v1133, %v2172
        %v2174 = vrot.slane %v2161, %v2173
        %v2175 = vlaneseq
        %v2176 = vshrl.u32 %v2175, 7
        %v2177 = vsub.s32 %v1138, %v2176
        %v2178 = vrot.slane %v2164, %v2177
        %v2179 = vsel %vm1143, %v2178, %v2174
        %v2180 = vlaneseq
        %v2181 = vshrl.u32 %v2180, 7
        %v2182 = vsub.s32 %v1145, %v2181
        %v2183 = vrot.slane %v2167, %v2182
        %v2184 = vsel %vm1150, %v2183, %v2179
        %v2185 = vlaneseq
        %v2186 = vshrl.u32 %v2185, 7
        %v2187 = vsub.s32 %v1152, %v2186
        %v2188 = vrot.slane %v2170, %v2187
        %v2189 = vsel %vm1157, %v2188, %v2184
        %v2190 = vpack.c.b16 %v2189, %v2189
        %v2192 = vsel %vm1307, %v2190, 0
        %2194 = vmatprep.subr.bf16.mxu0 0
        %2195 = vmatpush1.bf16.msra.mxu0 %v498
        %2196 = vmatprep.subr.bf16.mxu0 0
        %2197 = vmatpush1.bf16.msra.mxu0 %v499
        %2198 = vmatprep.subr.bf16.mxu0 0
        %2199 = vmatpush1.bf16.msra.mxu0 0
        %2200 = vmatprep.subr.bf16.mxu0 0
        %2201 = vmatpush1.bf16.msra.mxu0 0
        %2202 = vmatprep.subr.bf16.mxu0 0
        %2203 = vmatpush1.bf16.msra.mxu0 0
        %2204 = vmatprep.subr.bf16.mxu0 0
        %2205 = vmatpush1.bf16.msra.mxu0 0
        %2206 = vmatprep.subr.bf16.mxu0 0
        %2207 = vmatpush1.bf16.msra.mxu0 0
        %2208 = vmatprep.subr.bf16.mxu0 0
        %2209 = vmatpush1.bf16.msra.mxu0 0
        %2210 = vmatprep.subr.bf16.mxu0 0
        %2211 = vmatpush1.bf16.msra.mxu0 0
        %2212 = vmatprep.subr.bf16.mxu0 0
        %2213 = vmatpush1.bf16.msra.mxu0 0
        %2214 = vmatprep.subr.bf16.mxu0 0
        %2215 = vmatpush1.bf16.msra.mxu0 0
        %2216 = vmatprep.subr.bf16.mxu0 0
        %2217 = vmatpush1.bf16.msra.mxu0 0
        %2218 = vmatprep.subr.bf16.mxu0 0
        %2219 = vmatpush1.bf16.msra.mxu0 0
        %2220 = vmatprep.subr.bf16.mxu0 0
        %2221 = vmatpush1.bf16.msra.mxu0 0
        %2222 = vmatprep.subr.bf16.mxu0 0
        %2223 = vmatpush1.bf16.msra.mxu0 0
        %2224 = vmatprep.subr.bf16.mxu0 0
        %2225 = vmatpush1.bf16.msra.mxu0 0
        %2226 = vmatprep.mubr.bf16.mxu0 0
        %2227 = vmatmul.mubr.bf16.gmra.mrb[0].mxu0 %v2192
        %v2228 = vpop.f32.mrb[0].mxu0
        %v2229 = vadd.f32 0.0, %v2228
        %v2230 = vpop.f32.mrb[0].mxu0
        %v2231 = vpop.f32.mrb[0].mxu0
        %v2232 = vpop.f32.mrb[0].mxu0
        %2233 = vdwg.mxu0
        %v2236 = vunpack.c.l.b16 %v1823
        %v2237 = vunpack.c.h.b16 %v1823
        %v2238 = vunpack.c.l.b16 %v1824
        %v2239 = vunpack.c.h.b16 %v1824
        %2240 = vset.pattern.permute.xlu0 0
        %2241 = vperm.xlu0 %2240, %v2236
        %v2242 = vpop.permute.xlu0 %2241
        %2243 = vset.pattern.permute.xlu0 0
        %2244 = vperm.xlu0 %2243, %v2237
        %v2245 = vpop.permute.xlu0 %2244
        %2246 = vset.pattern.permute.xlu0 0
        %2247 = vperm.xlu0 %2246, %v2238
        %v2248 = vpop.permute.xlu0 %2247
        %2249 = vset.pattern.permute.xlu0 0
        %2250 = vperm.xlu0 %2249, %v2239
        %v2251 = vpop.permute.xlu0 %2250
        %v2252 = vlaneseq
        %v2253 = vshrl.u32 %v2252, 7
        %v2254 = vsub.s32 %v1133, %v2253
        %v2255 = vrot.slane %v2242, %v2254
        %v2256 = vlaneseq
        %v2257 = vshrl.u32 %v2256, 7
        %v2258 = vsub.s32 %v1138, %v2257
        %v2259 = vrot.slane %v2245, %v2258
        %v2260 = vsel %vm1143, %v2259, %v2255
        %v2261 = vlaneseq
        %v2262 = vshrl.u32 %v2261, 7
        %v2263 = vsub.s32 %v1145, %v2262
        %v2264 = vrot.slane %v2248, %v2263
        %v2265 = vsel %vm1150, %v2264, %v2260
        %v2266 = vlaneseq
        %v2267 = vshrl.u32 %v2266, 7
        %v2268 = vsub.s32 %v1152, %v2267
        %v2269 = vrot.slane %v2251, %v2268
        %v2270 = vsel %vm1157, %v2269, %v2265
        %v2271 = vpack.c.b16 %v2270, %v2270
        %v2273 = vsel %vm1307, %v2271, 0
        %2275 = vmatprep.subr.bf16.mxu0 0
        %2276 = vmatpush1.bf16.msra.mxu0 %v500
        %2277 = vmatprep.subr.bf16.mxu0 0
        %2278 = vmatpush1.bf16.msra.mxu0 %v501
        %2279 = vmatprep.subr.bf16.mxu0 0
        %2280 = vmatpush1.bf16.msra.mxu0 0
        %2281 = vmatprep.subr.bf16.mxu0 0
        %2282 = vmatpush1.bf16.msra.mxu0 0
        %2283 = vmatprep.subr.bf16.mxu0 0
        %2284 = vmatpush1.bf16.msra.mxu0 0
        %2285 = vmatprep.subr.bf16.mxu0 0
        %2286 = vmatpush1.bf16.msra.mxu0 0
        %2287 = vmatprep.subr.bf16.mxu0 0
        %2288 = vmatpush1.bf16.msra.mxu0 0
        %2289 = vmatprep.subr.bf16.mxu0 0
        %2290 = vmatpush1.bf16.msra.mxu0 0
        %2291 = vmatprep.subr.bf16.mxu0 0
        %2292 = vmatpush1.bf16.msra.mxu0 0
        %2293 = vmatprep.subr.bf16.mxu0 0
        %2294 = vmatpush1.bf16.msra.mxu0 0
        %2295 = vmatprep.subr.bf16.mxu0 0
        %2296 = vmatpush1.bf16.msra.mxu0 0
        %2297 = vmatprep.subr.bf16.mxu0 0
        %2298 = vmatpush1.bf16.msra.mxu0 0
        %2299 = vmatprep.subr.bf16.mxu0 0
        %2300 = vmatpush1.bf16.msra.mxu0 0
        %2301 = vmatprep.subr.bf16.mxu0 0
        %2302 = vmatpush1.bf16.msra.mxu0 0
        %2303 = vmatprep.subr.bf16.mxu0 0
        %2304 = vmatpush1.bf16.msra.mxu0 0
        %2305 = vmatprep.subr.bf16.mxu0 0
        %2306 = vmatpush1.bf16.msra.mxu0 0
        %2307 = vmatprep.mubr.bf16.mxu0 0
        %2308 = vmatmul.mubr.bf16.gmra.mrb[0].mxu0 %v2273
        %v2309 = vpop.f32.mrb[0].mxu0
        %v2310 = vadd.f32 0.0, %v2309
        %v2311 = vpop.f32.mrb[0].mxu0
        %v2312 = vpop.f32.mrb[0].mxu0
        %v2313 = vpop.f32.mrb[0].mxu0
        %2314 = vdwg.mxu0
        %v2317 = vunpack.c.l.b16 %v1825
        %v2318 = vunpack.c.h.b16 %v1825
        %v2319 = vunpack.c.l.b16 %v1826
        %v2320 = vunpack.c.h.b16 %v1826
        %2321 = vset.pattern.permute.xlu0 0
        %2322 = vperm.xlu0 %2321, %v2317
        %v2323 = vpop.permute.xlu0 %2322
        %2324 = vset.pattern.permute.xlu0 0
        %2325 = vperm.xlu0 %2324, %v2318
        %v2326 = vpop.permute.xlu0 %2325
        %2327 = vset.pattern.permute.xlu0 0
        %2328 = vperm.xlu0 %2327, %v2319
        %v2329 = vpop.permute.xlu0 %2328
        %2330 = vset.pattern.permute.xlu0 0
        %2331 = vperm.xlu0 %2330, %v2320
        %v2332 = vpop.permute.xlu0 %2331
        %v2333 = vlaneseq
        %v2334 = vshrl.u32 %v2333, 7
        %v2335 = vsub.s32 %v1133, %v2334
        %v2336 = vrot.slane %v2323, %v2335
        %v2337 = vlaneseq
        %v2338 = vshrl.u32 %v2337, 7
        %v2339 = vsub.s32 %v1138, %v2338
        %v2340 = vrot.slane %v2326, %v2339
        %v2341 = vsel %vm1143, %v2340, %v2336
        %v2342 = vlaneseq
        %v2343 = vshrl.u32 %v2342, 7
        %v2344 = vsub.s32 %v1145, %v2343
        %v2345 = vrot.slane %v2329, %v2344
        %v2346 = vsel %vm1150, %v2345, %v2341
        %v2347 = vlaneseq
        %v2348 = vshrl.u32 %v2347, 7
        %v2349 = vsub.s32 %v1152, %v2348
        %v2350 = vrot.slane %v2332, %v2349
        %v2351 = vsel %vm1157, %v2350, %v2346
        %v2352 = vpack.c.b16 %v2351, %v2351
        %v2354 = vsel %vm1307, %v2352, 0
        %2356 = vmatprep.subr.bf16.mxu0 0
        %2357 = vmatpush1.bf16.msra.mxu0 %v502
        %2358 = vmatprep.subr.bf16.mxu0 0
        %2359 = vmatpush1.bf16.msra.mxu0 %v503
        %2360 = vmatprep.subr.bf16.mxu0 0
        %2361 = vmatpush1.bf16.msra.mxu0 0
        %2362 = vmatprep.subr.bf16.mxu0 0
        %2363 = vmatpush1.bf16.msra.mxu0 0
        %2364 = vmatprep.subr.bf16.mxu0 0
        %2365 = vmatpush1.bf16.msra.mxu0 0
        %2366 = vmatprep.subr.bf16.mxu0 0
        %2367 = vmatpush1.bf16.msra.mxu0 0
        %2368 = vmatprep.subr.bf16.mxu0 0
        %2369 = vmatpush1.bf16.msra.mxu0 0
        %2370 = vmatprep.subr.bf16.mxu0 0
        %2371 = vmatpush1.bf16.msra.mxu0 0
        %2372 = vmatprep.subr.bf16.mxu0 0
        %2373 = vmatpush1.bf16.msra.mxu0 0
        %2374 = vmatprep.subr.bf16.mxu0 0
        %2375 = vmatpush1.bf16.msra.mxu0 0
        %2376 = vmatprep.subr.bf16.mxu0 0
        %2377 = vmatpush1.bf16.msra.mxu0 0
        %2378 = vmatprep.subr.bf16.mxu0 0
        %2379 = vmatpush1.bf16.msra.mxu0 0
        %2380 = vmatprep.subr.bf16.mxu0 0
        %2381 = vmatpush1.bf16.msra.mxu0 0
        %2382 = vmatprep.subr.bf16.mxu0 0
        %2383 = vmatpush1.bf16.msra.mxu0 0
        %2384 = vmatprep.subr.bf16.mxu0 0
        %2385 = vmatpush1.bf16.msra.mxu0 0
        %2386 = vmatprep.subr.bf16.mxu0 0
        %2387 = vmatpush1.bf16.msra.mxu0 0
        %2388 = vmatprep.mubr.bf16.mxu0 0
        %2389 = vmatmul.mubr.bf16.gmra.mrb[0].mxu0 %v2354
        %v2390 = vpop.f32.mrb[0].mxu0
        %v2391 = vadd.f32 0.0, %v2390
        %v2392 = vpop.f32.mrb[0].mxu0
        %v2393 = vpop.f32.mrb[0].mxu0
        %v2394 = vpop.f32.mrb[0].mxu0
        %2395 = vdwg.mxu0
        %v2398 = vunpack.c.l.b16 %v1827
        %v2399 = vunpack.c.h.b16 %v1827
        %v2400 = vunpack.c.l.b16 %v1828
        %v2401 = vunpack.c.h.b16 %v1828
        %2402 = vset.pattern.permute.xlu0 0
        %2403 = vperm.xlu0 %2402, %v2398
        %v2404 = vpop.permute.xlu0 %2403
        %2405 = vset.pattern.permute.xlu0 0
        %2406 = vperm.xlu0 %2405, %v2399
        %v2407 = vpop.permute.xlu0 %2406
        %2408 = vset.pattern.permute.xlu0 0
        %2409 = vperm.xlu0 %2408, %v2400
        %v2410 = vpop.permute.xlu0 %2409
        %2411 = vset.pattern.permute.xlu0 0
        %2412 = vperm.xlu0 %2411, %v2401
        %v2413 = vpop.permute.xlu0 %2412
        %v2414 = vlaneseq
        %v2415 = vshrl.u32 %v2414, 7
        %v2416 = vsub.s32 %v1133, %v2415
        %v2417 = vrot.slane %v2404, %v2416
        %v2418 = vlaneseq
        %v2419 = vshrl.u32 %v2418, 7
        %v2420 = vsub.s32 %v1138, %v2419
        %v2421 = vrot.slane %v2407, %v2420
        %v2422 = vsel %vm1143, %v2421, %v2417
        %v2423 = vlaneseq
        %v2424 = vshrl.u32 %v2423, 7
        %v2425 = vsub.s32 %v1145, %v2424
        %v2426 = vrot.slane %v2410, %v2425
        %v2427 = vsel %vm1150, %v2426, %v2422
        %v2428 = vlaneseq
        %v2429 = vshrl.u32 %v2428, 7
        %v2430 = vsub.s32 %v1152, %v2429
        %v2431 = vrot.slane %v2413, %v2430
        %v2432 = vsel %vm1157, %v2431, %v2427
        %v2433 = vpack.c.b16 %v2432, %v2432
        %v2435 = vsel %vm1307, %v2433, 0
        %2437 = vmatprep.subr.bf16.mxu0 0
        %2438 = vmatpush1.bf16.msra.mxu0 %v504
        %2439 = vmatprep.subr.bf16.mxu0 0
        %2440 = vmatpush1.bf16.msra.mxu0 %v505
        %2441 = vmatprep.subr.bf16.mxu0 0
        %2442 = vmatpush1.bf16.msra.mxu0 0
        %2443 = vmatprep.subr.bf16.mxu0 0
        %2444 = vmatpush1.bf16.msra.mxu0 0
        %2445 = vmatprep.subr.bf16.mxu0 0
        %2446 = vmatpush1.bf16.msra.mxu0 0
        %2447 = vmatprep.subr.bf16.mxu0 0
        %2448 = vmatpush1.bf16.msra.mxu0 0
        %2449 = vmatprep.subr.bf16.mxu0 0
        %2450 = vmatpush1.bf16.msra.mxu0 0
        %2451 = vmatprep.subr.bf16.mxu0 0
        %2452 = vmatpush1.bf16.msra.mxu0 0
        %2453 = vmatprep.subr.bf16.mxu0 0
        %2454 = vmatpush1.bf16.msra.mxu0 0
        %2455 = vmatprep.subr.bf16.mxu0 0
        %2456 = vmatpush1.bf16.msra.mxu0 0
        %2457 = vmatprep.subr.bf16.mxu0 0
        %2458 = vmatpush1.bf16.msra.mxu0 0
        %2459 = vmatprep.subr.bf16.mxu0 0
        %2460 = vmatpush1.bf16.msra.mxu0 0
        %2461 = vmatprep.subr.bf16.mxu0 0
        %2462 = vmatpush1.bf16.msra.mxu0 0
        %2463 = vmatprep.subr.bf16.mxu0 0
        %2464 = vmatpush1.bf16.msra.mxu0 0
        %2465 = vmatprep.subr.bf16.mxu0 0
        %2466 = vmatpush1.bf16.msra.mxu0 0
        %2467 = vmatprep.subr.bf16.mxu0 0
        %2468 = vmatpush1.bf16.msra.mxu0 0
        %2469 = vmatprep.mubr.bf16.mxu0 0
        %2470 = vmatmul.mubr.bf16.gmra.mrb[0].mxu0 %v2435
        %v2471 = vpop.f32.mrb[0].mxu0
        %v2472 = vadd.f32 0.0, %v2471
        %v2473 = vpop.f32.mrb[0].mxu0
        %v2474 = vpop.f32.mrb[0].mxu0
        %v2475 = vpop.f32.mrb[0].mxu0
        %2476 = vdwg.mxu0
        %2477 = vst [vmem:[%s367] sm:$0x1] %v1905
        %2478 = vst [vmem:[%s367 + $0x1] sm:$0x1] %v1986
        %2479 = vst [vmem:[%s367 + $0x2] sm:$0x1] %v2067
        %2480 = vst [vmem:[%s367 + $0x3] sm:$0x1] %v2148
        %2481 = vst [vmem:[%s367 + $0x4] sm:$0x1] %v2229
        %2482 = vst [vmem:[%s367 + $0x5] sm:$0x1] %v2310
        %2483 = vst [vmem:[%s367 + $0x6] sm:$0x1] %v2391
        %2484 = vst [vmem:[%s367 + $0x7] sm:$0x1] %v2472
        %2517 = vset.pattern.permute.xlu0 0
        %2518 = vperm.xlu0 %2517, %v1781
        %v2519 = vpop.permute.xlu0 %2518
        %2520 = vset.pattern.permute.xlu0 0
        %2521 = vperm.xlu0 %2520, %v1782
        %v2522 = vpop.permute.xlu0 %2521
        %2523 = vset.pattern.permute.xlu0 0
        %2524 = vperm.xlu0 %2523, %v1783
        %v2525 = vpop.permute.xlu0 %2524
        %2526 = vset.pattern.permute.xlu0 0
        %2527 = vperm.xlu0 %2526, %v1784
        %v2528 = vpop.permute.xlu0 %2527
        %2529 = vset.pattern.permute.xlu0 0
        %2530 = vperm.xlu0 %2529, %v1785
        %v2531 = vpop.permute.xlu0 %2530
        %2532 = vset.pattern.permute.xlu0 0
        %2533 = vperm.xlu0 %2532, %v1786
        %v2534 = vpop.permute.xlu0 %2533
        %2535 = vset.pattern.permute.xlu0 0
        %2536 = vperm.xlu0 %2535, %v1787
        %v2537 = vpop.permute.xlu0 %2536
        %2538 = vset.pattern.permute.xlu0 0
        %2539 = vperm.xlu0 %2538, %v1788
        %v2540 = vpop.permute.xlu0 %2539
        %2541 = vset.pattern.permute.xlu0 0
        %2542 = vperm.xlu0 %2541, %v1789
        %v2543 = vpop.permute.xlu0 %2542
        %2544 = vset.pattern.permute.xlu0 0
        %2545 = vperm.xlu0 %2544, %v1790
        %v2546 = vpop.permute.xlu0 %2545
        %2547 = vset.pattern.permute.xlu0 0
        %2548 = vperm.xlu0 %2547, %v1791
        %v2549 = vpop.permute.xlu0 %2548
        %2550 = vset.pattern.permute.xlu0 0
        %2551 = vperm.xlu0 %2550, %v1792
        %v2552 = vpop.permute.xlu0 %2551
        %2553 = vset.pattern.permute.xlu0 0
        %2554 = vperm.xlu0 %2553, %v1793
        %v2555 = vpop.permute.xlu0 %2554
        %2556 = vset.pattern.permute.xlu0 0
        %2557 = vperm.xlu0 %2556, %v1794
        %v2558 = vpop.permute.xlu0 %2557
        %2559 = vset.pattern.permute.xlu0 0
        %2560 = vperm.xlu0 %2559, %v1795
        %v2561 = vpop.permute.xlu0 %2560
        %2562 = vset.pattern.permute.xlu0 0
        %2563 = vperm.xlu0 %2562, %v1796
        %v2564 = vpop.permute.xlu0 %2563
        %2565 = vset.pattern.permute.xlu0 0
        %2566 = vperm.xlu0 %2565, %v1797
        %v2567 = vpop.permute.xlu0 %2566
        %2568 = vset.pattern.permute.xlu0 0
        %2569 = vperm.xlu0 %2568, %v1798
        %v2570 = vpop.permute.xlu0 %2569
        %2571 = vset.pattern.permute.xlu0 0
        %2572 = vperm.xlu0 %2571, %v1799
        %v2573 = vpop.permute.xlu0 %2572
        %2574 = vset.pattern.permute.xlu0 0
        %2575 = vperm.xlu0 %2574, %v1800
        %v2576 = vpop.permute.xlu0 %2575
        %2577 = vset.pattern.permute.xlu0 0
        %2578 = vperm.xlu0 %2577, %v1801
        %v2579 = vpop.permute.xlu0 %2578
        %2580 = vset.pattern.permute.xlu0 0
        %2581 = vperm.xlu0 %2580, %v1802
        %v2582 = vpop.permute.xlu0 %2581
        %2583 = vset.pattern.permute.xlu0 0
        %2584 = vperm.xlu0 %2583, %v1803
        %v2585 = vpop.permute.xlu0 %2584
        %2586 = vset.pattern.permute.xlu0 0
        %2587 = vperm.xlu0 %2586, %v1804
        %v2588 = vpop.permute.xlu0 %2587
        %2589 = vset.pattern.permute.xlu0 0
        %2590 = vperm.xlu0 %2589, %v1805
        %v2591 = vpop.permute.xlu0 %2590
        %2592 = vset.pattern.permute.xlu0 0
        %2593 = vperm.xlu0 %2592, %v1806
        %v2594 = vpop.permute.xlu0 %2593
        %2595 = vset.pattern.permute.xlu0 0
        %2596 = vperm.xlu0 %2595, %v1807
        %v2597 = vpop.permute.xlu0 %2596
        %2598 = vset.pattern.permute.xlu0 0
        %2599 = vperm.xlu0 %2598, %v1808
        %v2600 = vpop.permute.xlu0 %2599
        %2601 = vset.pattern.permute.xlu0 0
        %2602 = vperm.xlu0 %2601, %v1809
        %v2603 = vpop.permute.xlu0 %2602
        %2604 = vset.pattern.permute.xlu0 0
        %2605 = vperm.xlu0 %2604, %v1810
        %v2606 = vpop.permute.xlu0 %2605
        %2607 = vset.pattern.permute.xlu0 0
        %2608 = vperm.xlu0 %2607, %v1811
        %v2609 = vpop.permute.xlu0 %2608
        %2610 = vset.pattern.permute.xlu0 0
        %2611 = vperm.xlu0 %2610, %v1812
        %v2612 = vpop.permute.xlu0 %2611
        %v2613 = vlaneseq
        %v2614 = vshrl.u32 %v2613, 7
        %v2615 = vsub.s32 %v1133, %v2614
        %v2616 = vrot.slane %v2519, %v2615
        %v2617 = vlaneseq
        %v2618 = vshrl.u32 %v2617, 7
        %v2619 = vsub.s32 %v1138, %v2618
        %v2620 = vrot.slane %v2522, %v2619
        %v2621 = vsel %vm1143, %v2620, %v2616
        %v2622 = vlaneseq
        %v2623 = vshrl.u32 %v2622, 7
        %v2624 = vsub.s32 %v1145, %v2623
        %v2625 = vrot.slane %v2525, %v2624
        %v2626 = vsel %vm1150, %v2625, %v2621
        %v2627 = vlaneseq
        %v2628 = vshrl.u32 %v2627, 7
        %v2629 = vsub.s32 %v1152, %v2628
        %v2630 = vrot.slane %v2528, %v2629
        %v2631 = vsel %vm1157, %v2630, %v2626
        %v2632 = vlaneseq
        %v2633 = vshrl.u32 %v2632, 7
        %v2634 = vsub.s32 %v1133, %v2633
        %v2635 = vrot.slane %v2531, %v2634
        %v2636 = vlaneseq
        %v2637 = vshrl.u32 %v2636, 7
        %v2638 = vsub.s32 %v1138, %v2637
        %v2639 = vrot.slane %v2534, %v2638
        %v2640 = vsel %vm1143, %v2639, %v2635
        %v2641 = vlaneseq
        %v2642 = vshrl.u32 %v2641, 7
        %v2643 = vsub.s32 %v1145, %v2642
        %v2644 = vrot.slane %v2537, %v2643
        %v2645 = vsel %vm1150, %v2644, %v2640
        %v2646 = vlaneseq
        %v2647 = vshrl.u32 %v2646, 7
        %v2648 = vsub.s32 %v1152, %v2647
        %v2649 = vrot.slane %v2540, %v2648
        %v2650 = vsel %vm1157, %v2649, %v2645
        %v2651 = vlaneseq
        %v2652 = vshrl.u32 %v2651, 7
        %v2653 = vsub.s32 %v1133, %v2652
        %v2654 = vrot.slane %v2543, %v2653
        %v2655 = vlaneseq
        %v2656 = vshrl.u32 %v2655, 7
        %v2657 = vsub.s32 %v1138, %v2656
        %v2658 = vrot.slane %v2546, %v2657
        %v2659 = vsel %vm1143, %v2658, %v2654
        %v2660 = vlaneseq
        %v2661 = vshrl.u32 %v2660, 7
        %v2662 = vsub.s32 %v1145, %v2661
        %v2663 = vrot.slane %v2549, %v2662
        %v2664 = vsel %vm1150, %v2663, %v2659
        %v2665 = vlaneseq
        %v2666 = vshrl.u32 %v2665, 7
        %v2667 = vsub.s32 %v1152, %v2666
        %v2668 = vrot.slane %v2552, %v2667
        %v2669 = vsel %vm1157, %v2668, %v2664
        %v2670 = vlaneseq
        %v2671 = vshrl.u32 %v2670, 7
        %v2672 = vsub.s32 %v1133, %v2671
        %v2673 = vrot.slane %v2555, %v2672
        %v2674 = vlaneseq
        %v2675 = vshrl.u32 %v2674, 7
        %v2676 = vsub.s32 %v1138, %v2675
        %v2677 = vrot.slane %v2558, %v2676
        %v2678 = vsel %vm1143, %v2677, %v2673
        %v2679 = vlaneseq
        %v2680 = vshrl.u32 %v2679, 7
        %v2681 = vsub.s32 %v1145, %v2680
        %v2682 = vrot.slane %v2561, %v2681
        %v2683 = vsel %vm1150, %v2682, %v2678
        %v2684 = vlaneseq
        %v2685 = vshrl.u32 %v2684, 7
        %v2686 = vsub.s32 %v1152, %v2685
        %v2687 = vrot.slane %v2564, %v2686
        %v2688 = vsel %vm1157, %v2687, %v2683
        %v2689 = vlaneseq
        %v2690 = vshrl.u32 %v2689, 7
        %v2691 = vsub.s32 %v1133, %v2690
        %v2692 = vrot.slane %v2567, %v2691
        %v2693 = vlaneseq
        %v2694 = vshrl.u32 %v2693, 7
        %v2695 = vsub.s32 %v1138, %v2694
        %v2696 = vrot.slane %v2570, %v2695
        %v2697 = vsel %vm1143, %v2696, %v2692
        %v2698 = vlaneseq
        %v2699 = vshrl.u32 %v2698, 7
        %v2700 = vsub.s32 %v1145, %v2699
        %v2701 = vrot.slane %v2573, %v2700
        %v2702 = vsel %vm1150, %v2701, %v2697
        %v2703 = vlaneseq
        %v2704 = vshrl.u32 %v2703, 7
        %v2705 = vsub.s32 %v1152, %v2704
        %v2706 = vrot.slane %v2576, %v2705
        %v2707 = vsel %vm1157, %v2706, %v2702
        %v2708 = vlaneseq
        %v2709 = vshrl.u32 %v2708, 7
        %v2710 = vsub.s32 %v1133, %v2709
        %v2711 = vrot.slane %v2579, %v2710
        %v2712 = vlaneseq
        %v2713 = vshrl.u32 %v2712, 7
        %v2714 = vsub.s32 %v1138, %v2713
        %v2715 = vrot.slane %v2582, %v2714
        %v2716 = vsel %vm1143, %v2715, %v2711
        %v2717 = vlaneseq
        %v2718 = vshrl.u32 %v2717, 7
        %v2719 = vsub.s32 %v1145, %v2718
        %v2720 = vrot.slane %v2585, %v2719
        %v2721 = vsel %vm1150, %v2720, %v2716
        %v2722 = vlaneseq
        %v2723 = vshrl.u32 %v2722, 7
        %v2724 = vsub.s32 %v1152, %v2723
        %v2725 = vrot.slane %v2588, %v2724
        %v2726 = vsel %vm1157, %v2725, %v2721
        %v2727 = vlaneseq
        %v2728 = vshrl.u32 %v2727, 7
        %v2729 = vsub.s32 %v1133, %v2728
        %v2730 = vrot.slane %v2591, %v2729
        %v2731 = vlaneseq
        %v2732 = vshrl.u32 %v2731, 7
        %v2733 = vsub.s32 %v1138, %v2732
        %v2734 = vrot.slane %v2594, %v2733
        %v2735 = vsel %vm1143, %v2734, %v2730
        %v2736 = vlaneseq
        %v2737 = vshrl.u32 %v2736, 7
        %v2738 = vsub.s32 %v1145, %v2737
        %v2739 = vrot.slane %v2597, %v2738
        %v2740 = vsel %vm1150, %v2739, %v2735
        %v2741 = vlaneseq
        %v2742 = vshrl.u32 %v2741, 7
        %v2743 = vsub.s32 %v1152, %v2742
        %v2744 = vrot.slane %v2600, %v2743
        %v2745 = vsel %vm1157, %v2744, %v2740
        %v2746 = vlaneseq
        %v2747 = vshrl.u32 %v2746, 7
        %v2748 = vsub.s32 %v1133, %v2747
        %v2749 = vrot.slane %v2603, %v2748
        %v2750 = vlaneseq
        %v2751 = vshrl.u32 %v2750, 7
        %v2752 = vsub.s32 %v1138, %v2751
        %v2753 = vrot.slane %v2606, %v2752
        %v2754 = vsel %vm1143, %v2753, %v2749
        %v2755 = vlaneseq
        %v2756 = vshrl.u32 %v2755, 7
        %v2757 = vsub.s32 %v1145, %v2756
        %v2758 = vrot.slane %v2609, %v2757
        %v2759 = vsel %vm1150, %v2758, %v2754
        %v2760 = vlaneseq
        %v2761 = vshrl.u32 %v2760, 7
        %v2762 = vsub.s32 %v1152, %v2761
        %v2763 = vrot.slane %v2612, %v2762
        %v2764 = vsel %vm1157, %v2763, %v2759
        %v2765 = vsel %vm1292, %v2650, %v2631
        %v2766 = vsel %vm1294, %v2669, %v2765
        %v2767 = vsel %vm1296, %v2688, %v2766
        %v2768 = vsel %vm1298, %v2707, %v2767
        %v2769 = vsel %vm1300, %v2726, %v2768
        %v2770 = vsel %vm1302, %v2745, %v2769
        %v2771 = vsel %vm1304, %v2764, %v2770
        %2773 = vst.msk [vmem:[%s374] sm:$0xff] %vm1307, %v2771
        %s2774 = sand.u32 %s176, 1
        %s2775 = scalar_lea.sflag [#allocation4], %s2774
        %s2776 = sand.u32 %s176, 1
        %s2777 = smul.addr %s2776, 8
        %s2778 = scalar_lea.vmem [#allocation10], %s2777
        %s2779 = sand.u32 %s202, 1
        %s2780 = scalar_lea.sflag [#allocation12], %s2779
        %s2781 = sand.u32 %s202, 1
        %s2782 = smul.addr %s2781, 8
        %s2783 = scalar_lea.vmem [#allocation11], %s2782
        // Predicated region
        $region61: #{tpu_custom_call.1} parent=43 // pred_check
          %p2784 = pneg %p186
        $region62: #{tpu_custom_call.1} parent=43 // pred_check_branch
          %2786 = sbr.rel (%p2784) target = $region64
        $region63: #{tpu_custom_call.1} parent=43 // pred_region
          %s2787 = smul.u32 8, %s32
          %s2789 = ssub.s32 128, 128
          %2790 = vsyncadd %s2775, %s2789
          %s2791 = smul.addr %s2787, 16
          %s2792 = scalar_lea.hbm %s6, %s2791
          %s2793 = sshll.u32 %s2778, 4
          %s2794 = int_to_ptr.vmem [resolvable:$true] %s2793
          %2799 = dma.vmem_to_hbm [thread:$0]  %s2794, 128, %s2792, %s2775, 16, 16, 1
        $region64: #{tpu_custom_call.1} parent=43 // pred_fallthru
          _
        // Predicated region
        $region65: #{tpu_custom_call.1} parent=43 // pred_check
          %p2800 = pneg %p212
        $region66: #{tpu_custom_call.1} parent=43 // pred_check_branch
          %2802 = sbr.rel (%p2800) target = $region68
        $region67: #{tpu_custom_call.1} parent=43 // pred_region
          %s2804 = ssub.s32 128, 128
          %2805 = vsyncadd %s2780, %s2804
          %s2806 = smul.addr %s32, 128
          %s2807 = scalar_lea.hbm %s7, %s2806
          %s2809 = sshll.u32 %s2783, 4
          %s2810 = int_to_ptr.vmem [resolvable:$true] %s2809
          %2812 = dma.vmem_to_hbm [thread:$0]  %s2810, 128, %s2807, %s2780
        $region68: #{tpu_custom_call.1} parent=43 // pred_fallthru
          _
      $region44: #{tpu_custom_call.1} parent=5 // pred_fallthru
        _
      %p2813 = scmp.le.s32.totalorder 2, %s27
      // Predicated region
      $region69: #{tpu_custom_call.1} parent=5 // pred_check
        %p2814 = pneg %p2813
      $region70: #{tpu_custom_call.1} parent=5 // pred_check_branch
        %2816 = sbr.rel (%p2814) target = $region72
      $region71: #{tpu_custom_call.1} parent=5 // pred_region
        %s2817 = ssub.s32 %s27, 2
        // Predicated region
        $region73: #{tpu_custom_call.1} parent=71 // pred_check
          %p2818 = pneg %p192
        $region74: #{tpu_custom_call.1} parent=71 // pred_check_branch
          %2820 = sbr.rel (%p2818) target = $region76
        $region75: #{tpu_custom_call.1} parent=71 // pred_region
          %s2821 = sand.u32 %s177, 1
          %s2822 = scalar_lea.sflag [#allocation4], %s2821
          %s2823 = sand.u32 %s177, 1
          %s2824 = smul.addr %s2823, 8
          %s2825 = scalar_lea.vmem [#allocation10], %s2824
          %2826 = dma.done %s2822, 128
        $region76: #{tpu_custom_call.1} parent=71 // pred_fallthru
          _
        // Predicated region
        $region77: #{tpu_custom_call.1} parent=71 // pred_check
          %p2827 = pneg %p218
        $region78: #{tpu_custom_call.1} parent=71 // pred_check_branch
          %2829 = sbr.rel (%p2827) target = $region80
        $region79: #{tpu_custom_call.1} parent=71 // pred_region
          %s2830 = sand.u32 %s203, 1
          %s2831 = scalar_lea.sflag [#allocation12], %s2830
          %s2832 = sand.u32 %s203, 1
          %s2833 = smul.addr %s2832, 8
          %s2834 = scalar_lea.vmem [#allocation11], %s2833
          %2835 = dma.done %s2831, 128
        $region80: #{tpu_custom_call.1} parent=71 // pred_fallthru
          _
      $region72: #{tpu_custom_call.1} parent=5 // pred_fallthru
        _
    $region6: #{tpu_custom_call.1} parent=1 // loop_footer
      %s31 = sadd.s32 1, %s27
    $region7: #{tpu_custom_call.1} parent=1 // loop_footer_branch
      %26 = sbr.rel target = $region3
    $region8: #{tpu_custom_call.1} parent=1 // loop_exit
      _
    %2836 = vsyncpa [#allocation3], 1
    %s2837 = scalar_lea.sflag [#allocation3], 1
    %2838 = vsyncpa %s2837, 1
    %2839 = vsyncpa [#allocation6], 1
    %s2840 = scalar_lea.sflag [#allocation6], 1
    %2841 = vsyncpa %s2840, 1
    %2842 = vsyncpa [#allocation9], 1
    %2843 = vsyncpa [#allocation4], 1
    %s2844 = scalar_lea.sflag [#allocation4], 1
    %2845 = vsyncpa %s2844, 1
    %2846 = vsyncpa [#allocation12], 1
    %s2847 = scalar_lea.sflag [#allocation12], 1
    %2848 = vsyncpa %s2847, 1

</llo_original>
